<compile_context>
chip_gen: v6e
topology: v6e:2x2x1
jax: 0.10.0
libtpu: 0.0.40
codegen_flags: <defaults>
</compile_context>

<pallas_src>
import numpy as np
import jax
import jax.numpy as jnp
from jax.experimental import pallas as pl
from jax.experimental.pallas import tpu as pltpu

LEAKY_SLOPE = 0.2
H1, H2 = 512, 256
N_PAD = 128  # final output dim (1) padded up to one full lane width


def _round_up(x, m):
    return (x + m - 1) // m * m


def _leaky_relu(x):
    return jnp.where(x > 0, x, LEAKY_SLOPE * x)


def discriminator_kernel(x_ref, w1_ref, b1_ref, w2_ref, b2_ref, w3_ref, b3_ref,
                         out_ref):
    # One batch tile per grid step; all three GEMMs fused, weights resident in
    # VMEM (constant index_map -> fetched once / kept across the batch grid).
    x = x_ref[...]  # (TB, D_pad) f32
    h = jnp.dot(x.astype(jnp.bfloat16), w1_ref[...],
                preferred_element_type=jnp.float32) + b1_ref[...]
    h = _leaky_relu(h)
    h = jnp.dot(h.astype(jnp.bfloat16), w2_ref[...],
                preferred_element_type=jnp.float32) + b2_ref[...]
    h = _leaky_relu(h)
    out_ref[...] = jnp.dot(h.astype(jnp.bfloat16), w3_ref[...],
                           preferred_element_type=jnp.float32) + b3_ref[...]


def init_discriminator_params(key, img_shape):
    """PyTorch-style uniform(-1/sqrt(fan_in), 1/sqrt(fan_in)) init.

    Weights are stored pre-padded (lane-dense) and in bfloat16; biases in f32.
    Padded rows/cols are zero so they never affect the real outputs.
    """
    in_dim = int(np.prod(img_shape))
    d_pad = _round_up(in_dim, 128)
    dims = [(in_dim, H1), (H1, H2), (H2, 1)]
    keys = jax.random.split(key, 2 * len(dims))

    ws, bs = [], []
    for i, (fan_in, fan_out) in enumerate(dims):
        bound = 1.0 / np.sqrt(fan_in)
        w = jax.random.uniform(keys[2 * i], (fan_in, fan_out), jnp.float32,
                               -bound, bound)
        b = jax.random.uniform(keys[2 * i + 1], (1, fan_out), jnp.float32,
                               -bound, bound)
        ws.append(w)
        bs.append(b)

    # Pad layer-1 contraction dim (rows) and layer-3 output dim (cols).
    w1 = jnp.pad(ws[0], ((0, d_pad - in_dim), (0, 0)))
    w3 = jnp.pad(ws[2], ((0, 0), (0, N_PAD - 1)))
    b3 = jnp.pad(bs[2], ((0, 0), (0, N_PAD - 1)))

    return {
        "w1": w1.astype(jnp.bfloat16), "b1": bs[0],
        "w2": ws[1].astype(jnp.bfloat16), "b2": bs[1],
        "w3": w3.astype(jnp.bfloat16), "b3": b3,
        "in_dim": in_dim, "d_pad": d_pad,
    }


def discriminator_forward(img, params):
    B = img.shape[0]
    x = img.reshape(B, -1).astype(jnp.float32)          # img.view(B, -1)
    D = x.shape[1]
    d_pad = params["d_pad"]

    # Batch tiling: whole (8-aligned) batch as one tile when small, 128-row
    # tiles otherwise.  Splitting B is exact for this module (no BatchNorm).
    TB = 128 if B >= 128 else _round_up(B, 8)
    b_pad = _round_up(B, TB)
    x = jnp.pad(x, ((0, b_pad - B), (0, d_pad - D)))

    grid = (b_pad // TB,)

    out = pl.pallas_call(
        discriminator_kernel,
        out_shape=jax.ShapeDtypeStruct((b_pad, N_PAD), jnp.float32),
        grid_spec=pltpu.PrefetchScalarGridSpec(
            num_scalar_prefetch=0,
            grid=grid,
            in_specs=[
                pl.BlockSpec((TB, d_pad), lambda i: (i, 0)),   # x tile
                pl.BlockSpec((d_pad, H1), lambda i: (0, 0)),   # w1
                pl.BlockSpec((1, H1), lambda i: (0, 0)),       # b1
                pl.BlockSpec((H1, H2), lambda i: (0, 0)),      # w2
                pl.BlockSpec((1, H2), lambda i: (0, 0)),       # b2
                pl.BlockSpec((H2, N_PAD), lambda i: (0, 0)),   # w3 (padded N)
                pl.BlockSpec((1, N_PAD), lambda i: (0, 0)),    # b3 (padded N)
            ],
            out_specs=pl.BlockSpec((TB, N_PAD), lambda i: (i, 0)),
        ),
        compiler_params=pltpu.CompilerParams(
            dimension_semantics=("parallel",),
            vmem_limit_bytes=24 << 20,
        ),
    )(x, params["w1"], params["b1"], params["w2"], params["b2"],
      params["w3"], params["b3"])

    # Strip batch padding and the lane padding of the final layer.
    return out[:B, :1]


def discriminator_reference(img, params):
    """Pure-JAX reference using identical math (bf16 weights / matmul inputs,
    f32 accumulation) so the comparison is apples-to-apples."""
    B = img.shape[0]
    x = img.reshape(B, -1).astype(jnp.float32)
    x = jnp.pad(x, ((0, 0), (0, params["d_pad"] - x.shape[1])))
    h = jnp.dot(x.astype(jnp.bfloat16), params["w1"],
                preferred_element_type=jnp.float32) + params["b1"]
    h = _leaky_relu(h)
    h = jnp.dot(h.astype(jnp.bfloat16), params["w2"],
                preferred_element_type=jnp.float32) + params["b2"]
    h = _leaky_relu(h)
    out = jnp.dot(h.astype(jnp.bfloat16), params["w3"],
                  preferred_element_type=jnp.float32) + params["b3"]
    return out[:, :1]


if __name__ == "__main__":
    B = 8
    img_shape = (1, 28, 28)  # MNIST image shape (C, H, W)

    key = jax.random.PRNGKey(0)
    k_params, k_img = jax.random.split(key)
    params = init_discriminator_params(k_params, img_shape)
    img = jax.random.normal(k_img, (B, *img_shape), jnp.float32)

    validity = jax.block_until_ready(discriminator_forward(img, params))
    assert validity.shape == (B, 1), validity.shape

    ref = jax.block_until_ready(discriminator_reference(img, params))
    np.testing.assert_allclose(np.asarray(validity), np.asarray(ref),
                               rtol=1e-2, atol=1e-2)

    print("KERNEL_OK")
</pallas_src>

<mosaic_0001>
module attributes {stable_mosaic.version = 11 : i64} {
  func.func @discriminator_kernel(%arg0: i32, %arg1: memref<8x896xf32, #tpu.memory_space<vmem>>, %arg2: memref<896x512xbf16, #tpu.memory_space<vmem>>, %arg3: memref<1x512xf32, #tpu.memory_space<vmem>>, %arg4: memref<512x256xbf16, #tpu.memory_space<vmem>>, %arg5: memref<1x256xf32, #tpu.memory_space<vmem>>, %arg6: memref<256x128xbf16, #tpu.memory_space<vmem>>, %arg7: memref<1x128xf32, #tpu.memory_space<vmem>>, %arg8: memref<8x128xf32, #tpu.memory_space<vmem>>) attributes {dimension_semantics = [#tpu.dimension_semantics<parallel>], iteration_bounds = array<i64: 1>, scalar_prefetch = 0 : i64, scratch_operands = 0 : i64, tpu.core_type = #tpu.core_type<tc>, window_params = [{transform_indices = @transform_0, window_bounds = array<i64: 8, 896>}, {pipeline_mode = #tpu.pipeline_mode<synchronous>, transform_indices = @transform_1, window_bounds = array<i64: 896, 512>}, {pipeline_mode = #tpu.pipeline_mode<synchronous>, transform_indices = @transform_2, window_bounds = array<i64: 1, 512>}, {pipeline_mode = #tpu.pipeline_mode<synchronous>, transform_indices = @transform_3, window_bounds = array<i64: 512, 256>}, {pipeline_mode = #tpu.pipeline_mode<synchronous>, transform_indices = @transform_4, window_bounds = array<i64: 1, 256>}, {pipeline_mode = #tpu.pipeline_mode<synchronous>, transform_indices = @transform_5, window_bounds = array<i64: 256, 128>}, {pipeline_mode = #tpu.pipeline_mode<synchronous>, transform_indices = @transform_6, window_bounds = array<i64: 1, 128>}, {transform_indices = @transform_7, window_bounds = array<i64: 8, 128>}]} {
    %c0 = arith.constant 0 : index
    %c0_0 = arith.constant 0 : index
    %0 = vector.load %arg1[%c0, %c0_0] : memref<8x896xf32, #tpu.memory_space<vmem>>, vector<8x896xf32>
    %1 = arith.truncf %0 : vector<8x896xf32> to vector<8x896xbf16>
    %c0_1 = arith.constant 0 : index
    %c0_2 = arith.constant 0 : index
    %2 = vector.load %arg2[%c0_1, %c0_2] : memref<896x512xbf16, #tpu.memory_space<vmem>>, vector<896x512xbf16>
    %cst = arith.constant dense<0.000000e+00> : vector<8x512xf32>
    %3 = tpu.matmul %1, %2, %cst {dimension_numbers = #tpu.dot_dimension_numbers<[1], [0], [0], [1], [0, 0, 1, 1], [], []>} : vector<8x896xbf16>, vector<896x512xbf16>, vector<8x512xf32> -> vector<8x512xf32>
    %c0_3 = arith.constant 0 : index
    %c0_4 = arith.constant 0 : index
    %4 = vector.load %arg3[%c0_3, %c0_4] : memref<1x512xf32, #tpu.memory_space<vmem>>, vector<1x512xf32>
    %5 = vector.broadcast %4 : vector<1x512xf32> to vector<8x512xf32>
    %6 = arith.addf %3, %5 : vector<8x512xf32>
    %cst_5 = arith.constant 0.000000e+00 : f32
    %7 = vector.broadcast %cst_5 : f32 to vector<8x512xf32>
    %8 = arith.cmpf ogt, %6, %7 : vector<8x512xf32>
    %cst_6 = arith.constant 2.000000e-01 : f32
    %9 = vector.broadcast %cst_6 : f32 to vector<8x512xf32>
    %10 = arith.mulf %9, %6 : vector<8x512xf32>
    %11 = arith.select %8, %6, %10 : vector<8x512xi1>, vector<8x512xf32>
    %12 = arith.truncf %11 : vector<8x512xf32> to vector<8x512xbf16>
    %c0_7 = arith.constant 0 : index
    %c0_8 = arith.constant 0 : index
    %13 = vector.load %arg4[%c0_7, %c0_8] : memref<512x256xbf16, #tpu.memory_space<vmem>>, vector<512x256xbf16>
    %cst_9 = arith.constant dense<0.000000e+00> : vector<8x256xf32>
    %14 = tpu.matmul %12, %13, %cst_9 {dimension_numbers = #tpu.dot_dimension_numbers<[1], [0], [0], [1], [0, 0, 1, 1], [], []>} : vector<8x512xbf16>, vector<512x256xbf16>, vector<8x256xf32> -> vector<8x256xf32>
    %c0_10 = arith.constant 0 : index
    %c0_11 = arith.constant 0 : index
    %15 = vector.load %arg5[%c0_10, %c0_11] : memref<1x256xf32, #tpu.memory_space<vmem>>, vector<1x256xf32>
    %16 = vector.broadcast %15 : vector<1x256xf32> to vector<8x256xf32>
    %17 = arith.addf %14, %16 : vector<8x256xf32>
    %cst_12 = arith.constant 0.000000e+00 : f32
    %18 = vector.broadcast %cst_12 : f32 to vector<8x256xf32>
    %19 = arith.cmpf ogt, %17, %18 : vector<8x256xf32>
    %cst_13 = arith.constant 2.000000e-01 : f32
    %20 = vector.broadcast %cst_13 : f32 to vector<8x256xf32>
    %21 = arith.mulf %20, %17 : vector<8x256xf32>
    %22 = arith.select %19, %17, %21 : vector<8x256xi1>, vector<8x256xf32>
    %23 = arith.truncf %22 : vector<8x256xf32> to vector<8x256xbf16>
    %c0_14 = arith.constant 0 : index
    %c0_15 = arith.constant 0 : index
    %24 = vector.load %arg6[%c0_14, %c0_15] : memref<256x128xbf16, #tpu.memory_space<vmem>>, vector<256x128xbf16>
    %cst_16 = arith.constant dense<0.000000e+00> : vector<8x128xf32>
    %25 = tpu.matmul %23, %24, %cst_16 {dimension_numbers = #tpu.dot_dimension_numbers<[1], [0], [0], [1], [0, 0, 1, 1], [], []>} : vector<8x256xbf16>, vector<256x128xbf16>, vector<8x128xf32> -> vector<8x128xf32>
    %c0_17 = arith.constant 0 : index
    %c0_18 = arith.constant 0 : index
    %26 = vector.load %arg7[%c0_17, %c0_18] : memref<1x128xf32, #tpu.memory_space<vmem>>, vector<1x128xf32>
    %27 = vector.broadcast %26 : vector<1x128xf32> to vector<8x128xf32>
    %28 = arith.addf %25, %27 : vector<8x128xf32>
    %c0_19 = arith.constant 0 : index
    %c0_20 = arith.constant 0 : index
    %29 = vector.load %arg8[%c0_19, %c0_20] : memref<8x128xf32, #tpu.memory_space<vmem>>, vector<8x128xf32>
    tpu.vector_store %arg8[%c0_19, %c0_20], %28 {strides = array<i32>} : memref<8x128xf32, #tpu.memory_space<vmem>>, vector<8x128xf32>,
    return
  }
  func.func @transform_0(%arg0: i32) -> (i32, i32) {
    %c0_i32 = arith.constant 0 : i32
    %c0_i32_0 = arith.constant 0 : i32
    return %arg0, %c0_i32 : i32, i32
  }
  func.func @transform_1(%arg0: i32) -> (i32, i32) {
    %c0_i32 = arith.constant 0 : i32
    %c0_i32_0 = arith.constant 0 : i32
    %c0_i32_1 = arith.constant 0 : i32
    return %c0_i32, %c0_i32_0 : i32, i32
  }
  func.func @transform_2(%arg0: i32) -> (i32, i32) {
    %c0_i32 = arith.constant 0 : i32
    %c0_i32_0 = arith.constant 0 : i32
    %c0_i32_1 = arith.constant 0 : i32
    return %c0_i32, %c0_i32_0 : i32, i32
  }
  func.func @transform_3(%arg0: i32) -> (i32, i32) {
    %c0_i32 = arith.constant 0 : i32
    %c0_i32_0 = arith.constant 0 : i32
    %c0_i32_1 = arith.constant 0 : i32
    return %c0_i32, %c0_i32_0 : i32, i32
  }
  func.func @transform_4(%arg0: i32) -> (i32, i32) {
    %c0_i32 = arith.constant 0 : i32
    %c0_i32_0 = arith.constant 0 : i32
    %c0_i32_1 = arith.constant 0 : i32
    return %c0_i32, %c0_i32_0 : i32, i32
  }
  func.func @transform_5(%arg0: i32) -> (i32, i32) {
    %c0_i32 = arith.constant 0 : i32
    %c0_i32_0 = arith.constant 0 : i32
    %c0_i32_1 = arith.constant 0 : i32
    return %c0_i32, %c0_i32_0 : i32, i32
  }
  func.func @transform_6(%arg0: i32) -> (i32, i32) {
    %c0_i32 = arith.constant 0 : i32
    %c0_i32_0 = arith.constant 0 : i32
    %c0_i32_1 = arith.constant 0 : i32
    return %c0_i32, %c0_i32_0 : i32, i32
  }
  func.func @transform_7(%arg0: i32) -> (i32, i32) {
    %c0_i32 = arith.constant 0 : i32
    %c0_i32_0 = arith.constant 0 : i32
    return %arg0, %c0_i32 : i32, i32
  }
}

</mosaic_0001>

<llo_original>
// kernel: tpu_custom_call.1
$region0: #{tpu_custom_call.1}
  #allocation0 [shape = 'u32[]', space=smem, size = 0x4, offset = 0x4, fixed_abs, tag = 'smem constant byte address 0x4 - core index']
  #allocation1 [shape = 'u32[144,128]{1,0:T(1,128)}', space=vmem, size = 0x12000, scoped, tag = 'internal scratch']
  %s0 = inlined_call_operand.hbm [shape: f32[8,896], index: 0, kind: input, shape index: {}]
  %s1 = inlined_call_operand.hbm [shape: bf16[896,512], index: 1, kind: input, shape index: {}]
  %s2 = inlined_call_operand.hbm [shape: f32[1,512], index: 2, kind: input, shape index: {}]
  %s3 = inlined_call_operand.hbm [shape: bf16[512,256], index: 3, kind: input, shape index: {}]
  %s4 = inlined_call_operand.vmem [shape: f32[1,256], index: 4, kind: input, shape index: {}]
  %s5 = inlined_call_operand.hbm [shape: bf16[256,128], index: 5, kind: input, shape index: {}]
  %s6 = inlined_call_operand.vmem [shape: f32[1,128], index: 6, kind: input, shape index: {}]
  %s7 = inlined_call_operand.hbm [shape: f32[8,128], index: 7, kind: output, shape index: {}]
  %s8 = sld [smem:[#allocation0]]
  $region58: #{tpu_custom_call.1} parent=0
    _
  %s10 = ssub.s32 1, %s8
  %s11 = scalar_select 0, %s10, %s8
  $region1: #{tpu_custom_call.1} parent=0
    #allocation2 [shape = 'u8[28672]{0}', space=vmem, size = 0x7000, scoped, tag = 'input window, operand 0, single buffered']
    #allocation3 [shape = 's32[1]{0}', space=sflag, size = 0x4, scoped, tag = 'scoped memory for tpu_custom_call.1']
    #allocation4 [shape = 's32[1]{0}', space=sflag, size = 0x4, scoped, tag = 'scoped memory for tpu_custom_call.1']
    #allocation5 [shape = 'u8[917504]{0}', space=vmem, size = 0xe0000, scoped, tag = 'input window, operand 1, single buffered']
    #allocation6 [shape = 's32[1]{0}', space=sflag, size = 0x4, scoped, tag = 'scoped memory for tpu_custom_call.1']
    #allocation7 [shape = 'u8[2048]{0}', space=vmem, size = 0x800, scoped, tag = 'input window, operand 2, single buffered']
    #allocation8 [shape = 'u8[262144]{0}', space=vmem, size = 0x40000, scoped, tag = 'input window, operand 3, single buffered']
    #allocation9 [shape = 's32[1]{0}', space=sflag, size = 0x4, scoped, tag = 'scoped memory for tpu_custom_call.1']
    #allocation10 [shape = 'u8[65536]{0}', space=vmem, size = 0x10000, scoped, tag = 'input window, operand 5, single buffered']
    #allocation11 [shape = 'u8[4096]{0}', space=vmem, size = 0x1000, scoped, tag = 'output window, operand 0, single buffered']
    %12 = vsyncpa [#allocation3], 0
    %13 = vsyncpa [#allocation6], 0
    %14 = vsyncpa [#allocation9], 0
    %15 = vsyncpa [#allocation4], 0
    // Predicated region
    $region2: #{tpu_custom_call.1} parent=1 // pred_check
      _
    $region3: #{tpu_custom_call.1} parent=1 // pred_check_branch
      %17 = sbr.rel (0) target = $region5
    $region4: #{tpu_custom_call.1} parent=1 // pred_region
      %s19 = ssub.s32 896, 896
      %20 = vsyncadd [#allocation3], %s19
      %s22 = sshll.u32 [#allocation2], 4
      %s23 = int_to_ptr.vmem [resolvable:$true] %s22
      %25 = dma.hbm_to_vmem [thread:$0]  %s0, 896, %s23, [#allocation3]
    $region5: #{tpu_custom_call.1} parent=1 // pred_fallthru
      _
    // Predicated region
    $region6: #{tpu_custom_call.1} parent=1 // pred_check
      _
    $region7: #{tpu_custom_call.1} parent=1 // pred_check_branch
      %27 = sbr.rel (0) target = $region9
    $region8: #{tpu_custom_call.1} parent=1 // pred_region
      %s29 = ssub.s32 28672, 28672
      %30 = vsyncadd [#allocation6], %s29
      %s31 = sshll.u32 [#allocation5], 4
      %s32 = int_to_ptr.vmem [resolvable:$true] %s31
      %37 = dma.hbm_to_vmem [thread:$0]  %s1, 28672, %s32, [#allocation6], 256, 256, 16
    $region9: #{tpu_custom_call.1} parent=1 // pred_fallthru
      _
    // Predicated region
    $region10: #{tpu_custom_call.1} parent=1 // pred_check
      _
    $region11: #{tpu_custom_call.1} parent=1 // pred_check_branch
      %39 = sbr.rel (0) target = $region13
    $region12: #{tpu_custom_call.1} parent=1 // pred_region
      %s41 = ssub.s32 64, 64
      %42 = vsyncadd [#allocation6], %s41
      %s44 = sshll.u32 [#allocation7], 4
      %s45 = int_to_ptr.vmem [resolvable:$true] %s44
      %47 = dma.hbm_to_vmem [thread:$0]  %s2, 64, %s45, [#allocation6]
    $region13: #{tpu_custom_call.1} parent=1 // pred_fallthru
      _
    // Predicated region
    $region14: #{tpu_custom_call.1} parent=1 // pred_check
      _
    $region15: #{tpu_custom_call.1} parent=1 // pred_check_branch
      %49 = sbr.rel (0) target = $region17
    $region16: #{tpu_custom_call.1} parent=1 // pred_region
      %s51 = ssub.s32 8192, 8192
      %52 = vsyncadd [#allocation9], %s51
      %s53 = sshll.u32 [#allocation8], 4
      %s54 = int_to_ptr.vmem [resolvable:$true] %s53
      %59 = dma.hbm_to_vmem [thread:$0]  %s3, 8192, %s54, [#allocation9], 128, 128, 8
    $region17: #{tpu_custom_call.1} parent=1 // pred_fallthru
      _
    // Predicated region
    $region18: #{tpu_custom_call.1} parent=1 // pred_check
      _
    $region19: #{tpu_custom_call.1} parent=1 // pred_check_branch
      %61 = sbr.rel (0) target = $region21
    $region20: #{tpu_custom_call.1} parent=1 // pred_region
      _
    $region21: #{tpu_custom_call.1} parent=1 // pred_fallthru
      _
    // Predicated region
    $region22: #{tpu_custom_call.1} parent=1 // pred_check
      _
    $region23: #{tpu_custom_call.1} parent=1 // pred_check_branch
      %63 = sbr.rel (0) target = $region25
    $region24: #{tpu_custom_call.1} parent=1 // pred_region
      %s65 = ssub.s32 2048, 2048
      %66 = vsyncadd [#allocation9], %s65
      %s67 = sshll.u32 [#allocation10], 4
      %s68 = int_to_ptr.vmem [resolvable:$true] %s67
      %73 = dma.hbm_to_vmem [thread:$0]  %s5, 2048, %s68, [#allocation9], 64, 64, 4
    $region25: #{tpu_custom_call.1} parent=1 // pred_fallthru
      _
    // Predicated region
    $region26: #{tpu_custom_call.1} parent=1 // pred_check
      _
    $region27: #{tpu_custom_call.1} parent=1 // pred_check_branch
      %75 = sbr.rel (0) target = $region29
    $region28: #{tpu_custom_call.1} parent=1 // pred_region
      _
    $region29: #{tpu_custom_call.1} parent=1 // pred_fallthru
      _
    // Predicated region
    $region30: #{tpu_custom_call.1} parent=1 // pred_check
      _
    $region31: #{tpu_custom_call.1} parent=1 // pred_check_branch
      %77 = sbr.rel (0) target = $region33
    $region32: #{tpu_custom_call.1} parent=1 // pred_region
      %78 = dma.done [#allocation3], 896
    $region33: #{tpu_custom_call.1} parent=1 // pred_fallthru
      _
    // Predicated region
    $region34: #{tpu_custom_call.1} parent=1 // pred_check
      _
    $region35: #{tpu_custom_call.1} parent=1 // pred_check_branch
      %80 = sbr.rel (0) target = $region37
    $region36: #{tpu_custom_call.1} parent=1 // pred_region
      %81 = dma.done [#allocation6], 28672
    $region37: #{tpu_custom_call.1} parent=1 // pred_fallthru
      _
    // Predicated region
    $region38: #{tpu_custom_call.1} parent=1 // pred_check
      _
    $region39: #{tpu_custom_call.1} parent=1 // pred_check_branch
      %83 = sbr.rel (0) target = $region41
    $region40: #{tpu_custom_call.1} parent=1 // pred_region
      %84 = dma.done [#allocation6], 64
    $region41: #{tpu_custom_call.1} parent=1 // pred_fallthru
      _
    // Predicated region
    $region42: #{tpu_custom_call.1} parent=1 // pred_check
      _
    $region43: #{tpu_custom_call.1} parent=1 // pred_check_branch
      %86 = sbr.rel (0) target = $region45
    $region44: #{tpu_custom_call.1} parent=1 // pred_region
      %87 = dma.done [#allocation9], 8192
    $region45: #{tpu_custom_call.1} parent=1 // pred_fallthru
      _
    // Predicated region
    $region46: #{tpu_custom_call.1} parent=1 // pred_check
      _
    $region47: #{tpu_custom_call.1} parent=1 // pred_check_branch
      %89 = sbr.rel (0) target = $region49
    $region48: #{tpu_custom_call.1} parent=1 // pred_region
      %90 = dma.done [#allocation9], 2048
    $region49: #{tpu_custom_call.1} parent=1 // pred_fallthru
      _
    %v92 = vld [vmem:[#allocation2] sm:$0xff]
    %v93 = vld [vmem:[#allocation2 + $0x8] sm:$0xff]
    %v94 = vld [vmem:[#allocation2 + $0x10] sm:$0xff]
    %v95 = vld [vmem:[#allocation2 + $0x18] sm:$0xff]
    %v96 = vld [vmem:[#allocation2 + $0x20] sm:$0xff]
    %v97 = vld [vmem:[#allocation2 + $0x28] sm:$0xff]
    %v98 = vld [vmem:[#allocation2 + $0x30] sm:$0xff]
    %v99 = vpack.c.bf16 %v92, %v92
    %v100 = vpack.c.bf16 %v93, %v93
    %v101 = vpack.c.bf16 %v94, %v94
    %v102 = vpack.c.bf16 %v95, %v95
    %v103 = vpack.c.bf16 %v96, %v96
    %v104 = vpack.c.bf16 %v97, %v97
    %v105 = vpack.c.bf16 %v98, %v98
    %v106 = vld [vmem:[#allocation5] sm:$0xff]
    %v107 = vld [vmem:[#allocation5 + $0x8] sm:$0xff]
    %v108 = vld [vmem:[#allocation5 + $0x10] sm:$0xff]
    %v109 = vld [vmem:[#allocation5 + $0x18] sm:$0xff]
    %v110 = vld [vmem:[#allocation5 + $0x20] sm:$0xff]
    %v111 = vld [vmem:[#allocation5 + $0x28] sm:$0xff]
    %v112 = vld [vmem:[#allocation5 + $0x30] sm:$0xff]
    %v113 = vld [vmem:[#allocation5 + $0x38] sm:$0xff]
    %v114 = vld [vmem:[#allocation5 + $0x40] sm:$0xff]
    %v115 = vld [vmem:[#allocation5 + $0x48] sm:$0xff]
    %v116 = vld [vmem:[#allocation5 + $0x50] sm:$0xff]
    %v117 = vld [vmem:[#allocation5 + $0x58] sm:$0xff]
    %v118 = vld [vmem:[#allocation5 + $0x60] sm:$0xff]
    %v119 = vld [vmem:[#allocation5 + $0x68] sm:$0xff]
    %v120 = vld [vmem:[#allocation5 + $0x70] sm:$0xff]
    %v121 = vld [vmem:[#allocation5 + $0x78] sm:$0xff]
    %v122 = vld [vmem:[#allocation5 + $0x80] sm:$0xff]
    %v123 = vld [vmem:[#allocation5 + $0x88] sm:$0xff]
    %v124 = vld [vmem:[#allocation5 + $0x90] sm:$0xff]
    %v125 = vld [vmem:[#allocation5 + $0x98] sm:$0xff]
    %v126 = vld [vmem:[#allocation5 + $0xa0] sm:$0xff]
    %v127 = vld [vmem:[#allocation5 + $0xa8] sm:$0xff]
    %v128 = vld [vmem:[#allocation5 + $0xb0] sm:$0xff]
    %v129 = vld [vmem:[#allocation5 + $0xb8] sm:$0xff]
    %v130 = vld [vmem:[#allocation5 + $0xc0] sm:$0xff]
    %v131 = vld [vmem:[#allocation5 + $0xc8] sm:$0xff]
    %v132 = vld [vmem:[#allocation5 + $0xd0] sm:$0xff]
    %v133 = vld [vmem:[#allocation5 + $0xd8] sm:$0xff]
    %v134 = vld [vmem:[#allocation5 + $0xe0] sm:$0xff]
    %v135 = vld [vmem:[#allocation5 + $0xe8] sm:$0xff]
    %v136 = vld [vmem:[#allocation5 + $0xf0] sm:$0xff]
    %v137 = vld [vmem:[#allocation5 + $0xf8] sm:$0xff]
    %v138 = vld [vmem:[#allocation5 + $0x100] sm:$0xff]
    %v139 = vld [vmem:[#allocation5 + $0x108] sm:$0xff]
    %v140 = vld [vmem:[#allocation5 + $0x110] sm:$0xff]
    %v141 = vld [vmem:[#allocation5 + $0x118] sm:$0xff]
    %v142 = vld [vmem:[#allocation5 + $0x120] sm:$0xff]
    %v143 = vld [vmem:[#allocation5 + $0x128] sm:$0xff]
    %v144 = vld [vmem:[#allocation5 + $0x130] sm:$0xff]
    %v145 = vld [vmem:[#allocation5 + $0x138] sm:$0xff]
    %v146 = vld [vmem:[#allocation5 + $0x140] sm:$0xff]
    %v147 = vld [vmem:[#allocation5 + $0x148] sm:$0xff]
    %v148 = vld [vmem:[#allocation5 + $0x150] sm:$0xff]
    %v149 = vld [vmem:[#allocation5 + $0x158] sm:$0xff]
    %v150 = vld [vmem:[#allocation5 + $0x160] sm:$0xff]
    %v151 = vld [vmem:[#allocation5 + $0x168] sm:$0xff]
    %v152 = vld [vmem:[#allocation5 + $0x170] sm:$0xff]
    %v153 = vld [vmem:[#allocation5 + $0x178] sm:$0xff]
    %v154 = vld [vmem:[#allocation5 + $0x180] sm:$0xff]
    %v155 = vld [vmem:[#allocation5 + $0x188] sm:$0xff]
    %v156 = vld [vmem:[#allocation5 + $0x190] sm:$0xff]
    %v157 = vld [vmem:[#allocation5 + $0x198] sm:$0xff]
    %v158 = vld [vmem:[#allocation5 + $0x1a0] sm:$0xff]
    %v159 = vld [vmem:[#allocation5 + $0x1a8] sm:$0xff]
    %v160 = vld [vmem:[#allocation5 + $0x1b0] sm:$0xff]
    %v161 = vld [vmem:[#allocation5 + $0x1b8] sm:$0xff]
    %v162 = vld [vmem:[#allocation5 + $0x1c0] sm:$0xff]
    %v163 = vld [vmem:[#allocation5 + $0x1c8] sm:$0xff]
    %v164 = vld [vmem:[#allocation5 + $0x1d0] sm:$0xff]
    %v165 = vld [vmem:[#allocation5 + $0x1d8] sm:$0xff]
    %v166 = vld [vmem:[#allocation5 + $0x1e0] sm:$0xff]
    %v167 = vld [vmem:[#allocation5 + $0x1e8] sm:$0xff]
    %v168 = vld [vmem:[#allocation5 + $0x1f0] sm:$0xff]
    %v169 = vld [vmem:[#allocation5 + $0x1f8] sm:$0xff]
    %v170 = vld [vmem:[#allocation5 + $0x200] sm:$0xff]
    %v171 = vld [vmem:[#allocation5 + $0x208] sm:$0xff]
    %v172 = vld [vmem:[#allocation5 + $0x210] sm:$0xff]
    %v173 = vld [vmem:[#allocation5 + $0x218] sm:$0xff]
    %v174 = vld [vmem:[#allocation5 + $0x220] sm:$0xff]
    %v175 = vld [vmem:[#allocation5 + $0x228] sm:$0xff]
    %v176 = vld [vmem:[#allocation5 + $0x230] sm:$0xff]
    %v177 = vld [vmem:[#allocation5 + $0x238] sm:$0xff]
    %v178 = vld [vmem:[#allocation5 + $0x240] sm:$0xff]
    %v179 = vld [vmem:[#allocation5 + $0x248] sm:$0xff]
    %v180 = vld [vmem:[#allocation5 + $0x250] sm:$0xff]
    %v181 = vld [vmem:[#allocation5 + $0x258] sm:$0xff]
    %v182 = vld [vmem:[#allocation5 + $0x260] sm:$0xff]
    %v183 = vld [vmem:[#allocation5 + $0x268] sm:$0xff]
    %v184 = vld [vmem:[#allocation5 + $0x270] sm:$0xff]
    %v185 = vld [vmem:[#allocation5 + $0x278] sm:$0xff]
    %v186 = vld [vmem:[#allocation5 + $0x280] sm:$0xff]
    %v187 = vld [vmem:[#allocation5 + $0x288] sm:$0xff]
    %v188 = vld [vmem:[#allocation5 + $0x290] sm:$0xff]
    %v189 = vld [vmem:[#allocation5 + $0x298] sm:$0xff]
    %v190 = vld [vmem:[#allocation5 + $0x2a0] sm:$0xff]
    %v191 = vld [vmem:[#allocation5 + $0x2a8] sm:$0xff]
    %v192 = vld [vmem:[#allocation5 + $0x2b0] sm:$0xff]
    %v193 = vld [vmem:[#allocation5 + $0x2b8] sm:$0xff]
    %v194 = vld [vmem:[#allocation5 + $0x2c0] sm:$0xff]
    %v195 = vld [vmem:[#allocation5 + $0x2c8] sm:$0xff]
    %v196 = vld [vmem:[#allocation5 + $0x2d0] sm:$0xff]
    %v197 = vld [vmem:[#allocation5 + $0x2d8] sm:$0xff]
    %v198 = vld [vmem:[#allocation5 + $0x2e0] sm:$0xff]
    %v199 = vld [vmem:[#allocation5 + $0x2e8] sm:$0xff]
    %v200 = vld [vmem:[#allocation5 + $0x2f0] sm:$0xff]
    %v201 = vld [vmem:[#allocation5 + $0x2f8] sm:$0xff]
    %v202 = vld [vmem:[#allocation5 + $0x300] sm:$0xff]
    %v203 = vld [vmem:[#allocation5 + $0x308] sm:$0xff]
    %v204 = vld [vmem:[#allocation5 + $0x310] sm:$0xff]
    %v205 = vld [vmem:[#allocation5 + $0x318] sm:$0xff]
    %v206 = vld [vmem:[#allocation5 + $0x320] sm:$0xff]
    %v207 = vld [vmem:[#allocation5 + $0x328] sm:$0xff]
    %v208 = vld [vmem:[#allocation5 + $0x330] sm:$0xff]
    %v209 = vld [vmem:[#allocation5 + $0x338] sm:$0xff]
    %v210 = vld [vmem:[#allocation5 + $0x340] sm:$0xff]
    %v211 = vld [vmem:[#allocation5 + $0x348] sm:$0xff]
    %v212 = vld [vmem:[#allocation5 + $0x350] sm:$0xff]
    %v213 = vld [vmem:[#allocation5 + $0x358] sm:$0xff]
    %v214 = vld [vmem:[#allocation5 + $0x360] sm:$0xff]
    %v215 = vld [vmem:[#allocation5 + $0x368] sm:$0xff]
    %v216 = vld [vmem:[#allocation5 + $0x370] sm:$0xff]
    %v217 = vld [vmem:[#allocation5 + $0x378] sm:$0xff]
    %v218 = vld [vmem:[#allocation5 + $0x380] sm:$0xff]
    %v219 = vld [vmem:[#allocation5 + $0x388] sm:$0xff]
    %v220 = vld [vmem:[#allocation5 + $0x390] sm:$0xff]
    %v221 = vld [vmem:[#allocation5 + $0x398] sm:$0xff]
    %v222 = vld [vmem:[#allocation5 + $0x3a0] sm:$0xff]
    %v223 = vld [vmem:[#allocation5 + $0x3a8] sm:$0xff]
    %v224 = vld [vmem:[#allocation5 + $0x3b0] sm:$0xff]
    %v225 = vld [vmem:[#allocation5 + $0x3b8] sm:$0xff]
    %v226 = vld [vmem:[#allocation5 + $0x3c0] sm:$0xff]
    %v227 = vld [vmem:[#allocation5 + $0x3c8] sm:$0xff]
    %v228 = vld [vmem:[#allocation5 + $0x3d0] sm:$0xff]
    %v229 = vld [vmem:[#allocation5 + $0x3d8] sm:$0xff]
    %v230 = vld [vmem:[#allocation5 + $0x3e0] sm:$0xff]
    %v231 = vld [vmem:[#allocation5 + $0x3e8] sm:$0xff]
    %v232 = vld [vmem:[#allocation5 + $0x3f0] sm:$0xff]
    %v233 = vld [vmem:[#allocation5 + $0x3f8] sm:$0xff]
    %v234 = vld [vmem:[#allocation5 + $0x400] sm:$0xff]
    %v235 = vld [vmem:[#allocation5 + $0x408] sm:$0xff]
    %v236 = vld [vmem:[#allocation5 + $0x410] sm:$0xff]
    %v237 = vld [vmem:[#allocation5 + $0x418] sm:$0xff]
    %v238 = vld [vmem:[#allocation5 + $0x420] sm:$0xff]
    %v239 = vld [vmem:[#allocation5 + $0x428] sm:$0xff]
    %v240 = vld [vmem:[#allocation5 + $0x430] sm:$0xff]
    %v241 = vld [vmem:[#allocation5 + $0x438] sm:$0xff]
    %v242 = vld [vmem:[#allocation5 + $0x440] sm:$0xff]
    %v243 = vld [vmem:[#allocation5 + $0x448] sm:$0xff]
    %v244 = vld [vmem:[#allocation5 + $0x450] sm:$0xff]
    %v245 = vld [vmem:[#allocation5 + $0x458] sm:$0xff]
    %v246 = vld [vmem:[#allocation5 + $0x460] sm:$0xff]
    %v247 = vld [vmem:[#allocation5 + $0x468] sm:$0xff]
    %v248 = vld [vmem:[#allocation5 + $0x470] sm:$0xff]
    %v249 = vld [vmem:[#allocation5 + $0x478] sm:$0xff]
    %v250 = vld [vmem:[#allocation5 + $0x480] sm:$0xff]
    %v251 = vld [vmem:[#allocation5 + $0x488] sm:$0xff]
    %v252 = vld [vmem:[#allocation5 + $0x490] sm:$0xff]
    %v253 = vld [vmem:[#allocation5 + $0x498] sm:$0xff]
    %v254 = vld [vmem:[#allocation5 + $0x4a0] sm:$0xff]
    %v255 = vld [vmem:[#allocation5 + $0x4a8] sm:$0xff]
    %v256 = vld [vmem:[#allocation5 + $0x4b0] sm:$0xff]
    %v257 = vld [vmem:[#allocation5 + $0x4b8] sm:$0xff]
    %v258 = vld [vmem:[#allocation5 + $0x4c0] sm:$0xff]
    %v259 = vld [vmem:[#allocation5 + $0x4c8] sm:$0xff]
    %v260 = vld [vmem:[#allocation5 + $0x4d0] sm:$0xff]
    %v261 = vld [vmem:[#allocation5 + $0x4d8] sm:$0xff]
    %v262 = vld [vmem:[#allocation5 + $0x4e0] sm:$0xff]
    %v263 = vld [vmem:[#allocation5 + $0x4e8] sm:$0xff]
    %v264 = vld [vmem:[#allocation5 + $0x4f0] sm:$0xff]
    %v265 = vld [vmem:[#allocation5 + $0x4f8] sm:$0xff]
    %v266 = vld [vmem:[#allocation5 + $0x500] sm:$0xff]
    %v267 = vld [vmem:[#allocation5 + $0x508] sm:$0xff]
    %v268 = vld [vmem:[#allocation5 + $0x510] sm:$0xff]
    %v269 = vld [vmem:[#allocation5 + $0x518] sm:$0xff]
    %v270 = vld [vmem:[#allocation5 + $0x520] sm:$0xff]
    %v271 = vld [vmem:[#allocation5 + $0x528] sm:$0xff]
    %v272 = vld [vmem:[#allocation5 + $0x530] sm:$0xff]
    %v273 = vld [vmem:[#allocation5 + $0x538] sm:$0xff]
    %v274 = vld [vmem:[#allocation5 + $0x540] sm:$0xff]
    %v275 = vld [vmem:[#allocation5 + $0x548] sm:$0xff]
    %v276 = vld [vmem:[#allocation5 + $0x550] sm:$0xff]
    %v277 = vld [vmem:[#allocation5 + $0x558] sm:$0xff]
    %v278 = vld [vmem:[#allocation5 + $0x560] sm:$0xff]
    %v279 = vld [vmem:[#allocation5 + $0x568] sm:$0xff]
    %v280 = vld [vmem:[#allocation5 + $0x570] sm:$0xff]
    %v281 = vld [vmem:[#allocation5 + $0x578] sm:$0xff]
    %v282 = vld [vmem:[#allocation5 + $0x580] sm:$0xff]
    %v283 = vld [vmem:[#allocation5 + $0x588] sm:$0xff]
    %v284 = vld [vmem:[#allocation5 + $0x590] sm:$0xff]
    %v285 = vld [vmem:[#allocation5 + $0x598] sm:$0xff]
    %v286 = vld [vmem:[#allocation5 + $0x5a0] sm:$0xff]
    %v287 = vld [vmem:[#allocation5 + $0x5a8] sm:$0xff]
    %v288 = vld [vmem:[#allocation5 + $0x5b0] sm:$0xff]
    %v289 = vld [vmem:[#allocation5 + $0x5b8] sm:$0xff]
    %v290 = vld [vmem:[#allocation5 + $0x5c0] sm:$0xff]
    %v291 = vld [vmem:[#allocation5 + $0x5c8] sm:$0xff]
    %v292 = vld [vmem:[#allocation5 + $0x5d0] sm:$0xff]
    %v293 = vld [vmem:[#allocation5 + $0x5d8] sm:$0xff]
    %v294 = vld [vmem:[#allocation5 + $0x5e0] sm:$0xff]
    %v295 = vld [vmem:[#allocation5 + $0x5e8] sm:$0xff]
    %v296 = vld [vmem:[#allocation5 + $0x5f0] sm:$0xff]
    %v297 = vld [vmem:[#allocation5 + $0x5f8] sm:$0xff]
    %v298 = vld [vmem:[#allocation5 + $0x600] sm:$0xff]
    %v299 = vld [vmem:[#allocation5 + $0x608] sm:$0xff]
    %v300 = vld [vmem:[#allocation5 + $0x610] sm:$0xff]
    %v301 = vld [vmem:[#allocation5 + $0x618] sm:$0xff]
    %v302 = vld [vmem:[#allocation5 + $0x620] sm:$0xff]
    %v303 = vld [vmem:[#allocation5 + $0x628] sm:$0xff]
    %v304 = vld [vmem:[#allocation5 + $0x630] sm:$0xff]
    %v305 = vld [vmem:[#allocation5 + $0x638] sm:$0xff]
    %v306 = vld [vmem:[#allocation5 + $0x640] sm:$0xff]
    %v307 = vld [vmem:[#allocation5 + $0x648] sm:$0xff]
    %v308 = vld [vmem:[#allocation5 + $0x650] sm:$0xff]
    %v309 = vld [vmem:[#allocation5 + $0x658] sm:$0xff]
    %v310 = vld [vmem:[#allocation5 + $0x660] sm:$0xff]
    %v311 = vld [vmem:[#allocation5 + $0x668] sm:$0xff]
    %v312 = vld [vmem:[#allocation5 + $0x670] sm:$0xff]
    %v313 = vld [vmem:[#allocation5 + $0x678] sm:$0xff]
    %v314 = vld [vmem:[#allocation5 + $0x680] sm:$0xff]
    %v315 = vld [vmem:[#allocation5 + $0x688] sm:$0xff]
    %v316 = vld [vmem:[#allocation5 + $0x690] sm:$0xff]
    %v317 = vld [vmem:[#allocation5 + $0x698] sm:$0xff]
    %v318 = vld [vmem:[#allocation5 + $0x6a0] sm:$0xff]
    %v319 = vld [vmem:[#allocation5 + $0x6a8] sm:$0xff]
    %v320 = vld [vmem:[#allocation5 + $0x6b0] sm:$0xff]
    %v321 = vld [vmem:[#allocation5 + $0x6b8] sm:$0xff]
    %v322 = vld [vmem:[#allocation5 + $0x6c0] sm:$0xff]
    %v323 = vld [vmem:[#allocation5 + $0x6c8] sm:$0xff]
    %v324 = vld [vmem:[#allocation5 + $0x6d0] sm:$0xff]
    %v325 = vld [vmem:[#allocation5 + $0x6d8] sm:$0xff]
    %v326 = vld [vmem:[#allocation5 + $0x6e0] sm:$0xff]
    %v327 = vld [vmem:[#allocation5 + $0x6e8] sm:$0xff]
    %v328 = vld [vmem:[#allocation5 + $0x6f0] sm:$0xff]
    %v329 = vld [vmem:[#allocation5 + $0x6f8] sm:$0xff]
    %v330 = vld [vmem:[#allocation7] sm:$0xf]
    %v332 = vlaneseq
    %v333 = vshrl.u32 %v332, 7
    %v334 = vsub.s32 0, %v333
    %v335 = vrot.slane %v330, %v334
    %v336 = vlaneseq
    %v337 = vshrl.u32 %v336, 7
    %v338 = vsub.s32 1, %v337
    %v339 = vrot.slane %v330, %v338
    %v340 = vlaneseq
    %v341 = vshrl.u32 %v340, 7
    %v342 = vsub.s32 2, %v341
    %v343 = vrot.slane %v330, %v342
    %v344 = vlaneseq
    %v345 = vshrl.u32 %v344, 7
    %v346 = vsub.s32 3, %v345
    %v347 = vrot.slane %v330, %v346
    %v576 = vunpack.c.l.b16 %v106
    %v577 = vunpack.c.h.b16 %v106
    %v578 = vunpack.c.l.b16 %v107
    %v579 = vunpack.c.h.b16 %v107
    %v580 = vunpack.c.l.b16 %v108
    %v581 = vunpack.c.h.b16 %v108
    %v582 = vunpack.c.l.b16 %v109
    %v583 = vunpack.c.h.b16 %v109
    %v584 = vunpack.c.l.b16 %v110
    %v585 = vunpack.c.h.b16 %v110
    %v586 = vunpack.c.l.b16 %v111
    %v587 = vunpack.c.h.b16 %v111
    %v588 = vunpack.c.l.b16 %v112
    %v589 = vunpack.c.h.b16 %v112
    %v590 = vunpack.c.l.b16 %v113
    %v591 = vunpack.c.h.b16 %v113
    %v592 = vunpack.c.l.b16 %v114
    %v593 = vunpack.c.h.b16 %v114
    %v594 = vunpack.c.l.b16 %v115
    %v595 = vunpack.c.h.b16 %v115
    %v596 = vunpack.c.l.b16 %v116
    %v597 = vunpack.c.h.b16 %v116
    %v598 = vunpack.c.l.b16 %v117
    %v599 = vunpack.c.h.b16 %v117
    %v600 = vunpack.c.l.b16 %v118
    %v601 = vunpack.c.h.b16 %v118
    %v602 = vunpack.c.l.b16 %v119
    %v603 = vunpack.c.h.b16 %v119
    %v604 = vunpack.c.l.b16 %v120
    %v605 = vunpack.c.h.b16 %v120
    %v606 = vunpack.c.l.b16 %v121
    %v607 = vunpack.c.h.b16 %v121
    %v608 = vunpack.c.l.b16 %v122
    %v609 = vunpack.c.h.b16 %v122
    %v610 = vunpack.c.l.b16 %v123
    %v611 = vunpack.c.h.b16 %v123
    %v612 = vunpack.c.l.b16 %v124
    %v613 = vunpack.c.h.b16 %v124
    %v614 = vunpack.c.l.b16 %v125
    %v615 = vunpack.c.h.b16 %v125
    %v616 = vunpack.c.l.b16 %v126
    %v617 = vunpack.c.h.b16 %v126
    %v618 = vunpack.c.l.b16 %v127
    %v619 = vunpack.c.h.b16 %v127
    %v620 = vunpack.c.l.b16 %v128
    %v621 = vunpack.c.h.b16 %v128
    %v622 = vunpack.c.l.b16 %v129
    %v623 = vunpack.c.h.b16 %v129
    %v624 = vunpack.c.l.b16 %v130
    %v625 = vunpack.c.h.b16 %v130
    %v626 = vunpack.c.l.b16 %v131
    %v627 = vunpack.c.h.b16 %v131
    %v628 = vunpack.c.l.b16 %v132
    %v629 = vunpack.c.h.b16 %v132
    %v630 = vunpack.c.l.b16 %v133
    %v631 = vunpack.c.h.b16 %v133
    %v632 = vunpack.c.l.b16 %v134
    %v633 = vunpack.c.h.b16 %v134
    %v634 = vunpack.c.l.b16 %v135
    %v635 = vunpack.c.h.b16 %v135
    %v636 = vunpack.c.l.b16 %v136
    %v637 = vunpack.c.h.b16 %v136
    %v638 = vunpack.c.l.b16 %v137
    %v639 = vunpack.c.h.b16 %v137
    %v640 = vunpack.c.l.b16 %v138
    %v641 = vunpack.c.h.b16 %v138
    %v642 = vunpack.c.l.b16 %v139
    %v643 = vunpack.c.h.b16 %v139
    %v644 = vunpack.c.l.b16 %v140
    %v645 = vunpack.c.h.b16 %v140
    %v646 = vunpack.c.l.b16 %v141
    %v647 = vunpack.c.h.b16 %v141
    %v648 = vunpack.c.l.b16 %v142
    %v649 = vunpack.c.h.b16 %v142
    %v650 = vunpack.c.l.b16 %v143
    %v651 = vunpack.c.h.b16 %v143
    %v652 = vunpack.c.l.b16 %v144
    %v653 = vunpack.c.h.b16 %v144
    %v654 = vunpack.c.l.b16 %v145
    %v655 = vunpack.c.h.b16 %v145
    %v656 = vunpack.c.l.b16 %v146
    %v657 = vunpack.c.h.b16 %v146
    %v658 = vunpack.c.l.b16 %v147
    %v659 = vunpack.c.h.b16 %v147
    %v660 = vunpack.c.l.b16 %v148
    %v661 = vunpack.c.h.b16 %v148
    %v662 = vunpack.c.l.b16 %v149
    %v663 = vunpack.c.h.b16 %v149
    %v664 = vunpack.c.l.b16 %v150
    %v665 = vunpack.c.h.b16 %v150
    %v666 = vunpack.c.l.b16 %v151
    %v667 = vunpack.c.h.b16 %v151
    %v668 = vunpack.c.l.b16 %v152
    %v669 = vunpack.c.h.b16 %v152
    %v670 = vunpack.c.l.b16 %v153
    %v671 = vunpack.c.h.b16 %v153
    %v672 = vunpack.c.l.b16 %v154
    %v673 = vunpack.c.h.b16 %v154
    %v674 = vunpack.c.l.b16 %v155
    %v675 = vunpack.c.h.b16 %v155
    %v676 = vunpack.c.l.b16 %v156
    %v677 = vunpack.c.h.b16 %v156
    %v678 = vunpack.c.l.b16 %v157
    %v679 = vunpack.c.h.b16 %v157
    %v680 = vunpack.c.l.b16 %v158
    %v681 = vunpack.c.h.b16 %v158
    %v682 = vunpack.c.l.b16 %v159
    %v683 = vunpack.c.h.b16 %v159
    %v684 = vunpack.c.l.b16 %v160
    %v685 = vunpack.c.h.b16 %v160
    %v686 = vunpack.c.l.b16 %v161
    %v687 = vunpack.c.h.b16 %v161
    %v688 = vunpack.c.l.b16 %v162
    %v689 = vunpack.c.h.b16 %v162
    %v690 = vunpack.c.l.b16 %v163
    %v691 = vunpack.c.h.b16 %v163
    %v692 = vunpack.c.l.b16 %v164
    %v693 = vunpack.c.h.b16 %v164
    %v694 = vunpack.c.l.b16 %v165
    %v695 = vunpack.c.h.b16 %v165
    %v696 = vunpack.c.l.b16 %v166
    %v697 = vunpack.c.h.b16 %v166
    %v698 = vunpack.c.l.b16 %v167
    %v699 = vunpack.c.h.b16 %v167
    %v700 = vunpack.c.l.b16 %v168
    %v701 = vunpack.c.h.b16 %v168
    %v702 = vunpack.c.l.b16 %v169
    %v703 = vunpack.c.h.b16 %v169
    %v704 = vunpack.c.l.b16 %v170
    %v705 = vunpack.c.h.b16 %v170
    %v706 = vunpack.c.l.b16 %v171
    %v707 = vunpack.c.h.b16 %v171
    %v708 = vunpack.c.l.b16 %v172
    %v709 = vunpack.c.h.b16 %v172
    %v710 = vunpack.c.l.b16 %v173
    %v711 = vunpack.c.h.b16 %v173
    %v712 = vunpack.c.l.b16 %v174
    %v713 = vunpack.c.h.b16 %v174
    %v714 = vunpack.c.l.b16 %v175
    %v715 = vunpack.c.h.b16 %v175
    %v716 = vunpack.c.l.b16 %v176
    %v717 = vunpack.c.h.b16 %v176
    %v718 = vunpack.c.l.b16 %v177
    %v719 = vunpack.c.h.b16 %v177
    %v720 = vunpack.c.l.b16 %v178
    %v721 = vunpack.c.h.b16 %v178
    %v722 = vunpack.c.l.b16 %v179
    %v723 = vunpack.c.h.b16 %v179
    %v724 = vunpack.c.l.b16 %v180
    %v725 = vunpack.c.h.b16 %v180
    %v726 = vunpack.c.l.b16 %v181
    %v727 = vunpack.c.h.b16 %v181
    %v728 = vunpack.c.l.b16 %v182
    %v729 = vunpack.c.h.b16 %v182
    %v730 = vunpack.c.l.b16 %v183
    %v731 = vunpack.c.h.b16 %v183
    %v732 = vunpack.c.l.b16 %v184
    %v733 = vunpack.c.h.b16 %v184
    %v734 = vunpack.c.l.b16 %v185
    %v735 = vunpack.c.h.b16 %v185
    %v736 = vunpack.c.l.b16 %v186
    %v737 = vunpack.c.h.b16 %v186
    %v738 = vunpack.c.l.b16 %v187
    %v739 = vunpack.c.h.b16 %v187
    %v740 = vunpack.c.l.b16 %v188
    %v741 = vunpack.c.h.b16 %v188
    %v742 = vunpack.c.l.b16 %v189
    %v743 = vunpack.c.h.b16 %v189
    %v744 = vunpack.c.l.b16 %v190
    %v745 = vunpack.c.h.b16 %v190
    %v746 = vunpack.c.l.b16 %v191
    %v747 = vunpack.c.h.b16 %v191
    %v748 = vunpack.c.l.b16 %v192
    %v749 = vunpack.c.h.b16 %v192
    %v750 = vunpack.c.l.b16 %v193
    %v751 = vunpack.c.h.b16 %v193
    %v752 = vunpack.c.l.b16 %v194
    %v753 = vunpack.c.h.b16 %v194
    %v754 = vunpack.c.l.b16 %v195
    %v755 = vunpack.c.h.b16 %v195
    %v756 = vunpack.c.l.b16 %v196
    %v757 = vunpack.c.h.b16 %v196
    %v758 = vunpack.c.l.b16 %v197
    %v759 = vunpack.c.h.b16 %v197
    %v760 = vunpack.c.l.b16 %v198
    %v761 = vunpack.c.h.b16 %v198
    %v762 = vunpack.c.l.b16 %v199
    %v763 = vunpack.c.h.b16 %v199
    %v764 = vunpack.c.l.b16 %v200
    %v765 = vunpack.c.h.b16 %v200
    %v766 = vunpack.c.l.b16 %v201
    %v767 = vunpack.c.h.b16 %v201
    %v768 = vunpack.c.l.b16 %v202
    %v769 = vunpack.c.h.b16 %v202
    %v770 = vunpack.c.l.b16 %v203
    %v771 = vunpack.c.h.b16 %v203
    %v772 = vunpack.c.l.b16 %v204
    %v773 = vunpack.c.h.b16 %v204
    %v774 = vunpack.c.l.b16 %v205
    %v775 = vunpack.c.h.b16 %v205
    %v776 = vunpack.c.l.b16 %v206
    %v777 = vunpack.c.h.b16 %v206
    %v778 = vunpack.c.l.b16 %v207
    %v779 = vunpack.c.h.b16 %v207
    %v780 = vunpack.c.l.b16 %v208
    %v781 = vunpack.c.h.b16 %v208
    %v782 = vunpack.c.l.b16 %v209
    %v783 = vunpack.c.h.b16 %v209
    %v784 = vunpack.c.l.b16 %v210
    %v785 = vunpack.c.h.b16 %v210
    %v786 = vunpack.c.l.b16 %v211
    %v787 = vunpack.c.h.b16 %v211
    %v788 = vunpack.c.l.b16 %v212
    %v789 = vunpack.c.h.b16 %v212
    %v790 = vunpack.c.l.b16 %v213
    %v791 = vunpack.c.h.b16 %v213
    %v792 = vunpack.c.l.b16 %v214
    %v793 = vunpack.c.h.b16 %v214
    %v794 = vunpack.c.l.b16 %v215
    %v795 = vunpack.c.h.b16 %v215
    %v796 = vunpack.c.l.b16 %v216
    %v797 = vunpack.c.h.b16 %v216
    %v798 = vunpack.c.l.b16 %v217
    %v799 = vunpack.c.h.b16 %v217
    %v800 = vunpack.c.l.b16 %v218
    %v801 = vunpack.c.h.b16 %v218
    %v802 = vunpack.c.l.b16 %v219
    %v803 = vunpack.c.h.b16 %v219
    %v804 = vunpack.c.l.b16 %v220
    %v805 = vunpack.c.h.b16 %v220
    %v806 = vunpack.c.l.b16 %v221
    %v807 = vunpack.c.h.b16 %v221
    %v808 = vunpack.c.l.b16 %v222
    %v809 = vunpack.c.h.b16 %v222
    %v810 = vunpack.c.l.b16 %v223
    %v811 = vunpack.c.h.b16 %v223
    %v812 = vunpack.c.l.b16 %v224
    %v813 = vunpack.c.h.b16 %v224
    %v814 = vunpack.c.l.b16 %v225
    %v815 = vunpack.c.h.b16 %v225
    %v816 = vunpack.c.l.b16 %v226
    %v817 = vunpack.c.h.b16 %v226
    %v818 = vunpack.c.l.b16 %v227
    %v819 = vunpack.c.h.b16 %v227
    %v820 = vunpack.c.l.b16 %v228
    %v821 = vunpack.c.h.b16 %v228
    %v822 = vunpack.c.l.b16 %v229
    %v823 = vunpack.c.h.b16 %v229
    %v824 = vunpack.c.l.b16 %v230
    %v825 = vunpack.c.h.b16 %v230
    %v826 = vunpack.c.l.b16 %v231
    %v827 = vunpack.c.h.b16 %v231
    %v828 = vunpack.c.l.b16 %v232
    %v829 = vunpack.c.h.b16 %v232
    %v830 = vunpack.c.l.b16 %v233
    %v831 = vunpack.c.h.b16 %v233
    %v832 = vunpack.c.l.b16 %v234
    %v833 = vunpack.c.h.b16 %v234
    %v834 = vunpack.c.l.b16 %v235
    %v835 = vunpack.c.h.b16 %v235
    %v836 = vunpack.c.l.b16 %v236
    %v837 = vunpack.c.h.b16 %v236
    %v838 = vunpack.c.l.b16 %v237
    %v839 = vunpack.c.h.b16 %v237
    %v840 = vunpack.c.l.b16 %v238
    %v841 = vunpack.c.h.b16 %v238
    %v842 = vunpack.c.l.b16 %v239
    %v843 = vunpack.c.h.b16 %v239
    %v844 = vunpack.c.l.b16 %v240
    %v845 = vunpack.c.h.b16 %v240
    %v846 = vunpack.c.l.b16 %v241
    %v847 = vunpack.c.h.b16 %v241
    %v848 = vunpack.c.l.b16 %v242
    %v849 = vunpack.c.h.b16 %v242
    %v850 = vunpack.c.l.b16 %v243
    %v851 = vunpack.c.h.b16 %v243
    %v852 = vunpack.c.l.b16 %v244
    %v853 = vunpack.c.h.b16 %v244
    %v854 = vunpack.c.l.b16 %v245
    %v855 = vunpack.c.h.b16 %v245
    %v856 = vunpack.c.l.b16 %v246
    %v857 = vunpack.c.h.b16 %v246
    %v858 = vunpack.c.l.b16 %v247
    %v859 = vunpack.c.h.b16 %v247
    %v860 = vunpack.c.l.b16 %v248
    %v861 = vunpack.c.h.b16 %v248
    %v862 = vunpack.c.l.b16 %v249
    %v863 = vunpack.c.h.b16 %v249
    %v864 = vunpack.c.l.b16 %v250
    %v865 = vunpack.c.h.b16 %v250
    %v866 = vunpack.c.l.b16 %v251
    %v867 = vunpack.c.h.b16 %v251
    %v868 = vunpack.c.l.b16 %v252
    %v869 = vunpack.c.h.b16 %v252
    %v870 = vunpack.c.l.b16 %v253
    %v871 = vunpack.c.h.b16 %v253
    %v872 = vunpack.c.l.b16 %v254
    %v873 = vunpack.c.h.b16 %v254
    %v874 = vunpack.c.l.b16 %v255
    %v875 = vunpack.c.h.b16 %v255
    %v876 = vunpack.c.l.b16 %v256
    %v877 = vunpack.c.h.b16 %v256
    %v878 = vunpack.c.l.b16 %v257
    %v879 = vunpack.c.h.b16 %v257
    %v880 = vunpack.c.l.b16 %v258
    %v881 = vunpack.c.h.b16 %v258
    %v882 = vunpack.c.l.b16 %v259
    %v883 = vunpack.c.h.b16 %v259
    %v884 = vunpack.c.l.b16 %v260
    %v885 = vunpack.c.h.b16 %v260
    %v886 = vunpack.c.l.b16 %v261
    %v887 = vunpack.c.h.b16 %v261
    %v888 = vunpack.c.l.b16 %v262
    %v889 = vunpack.c.h.b16 %v262
    %v890 = vunpack.c.l.b16 %v263
    %v891 = vunpack.c.h.b16 %v263
    %v892 = vunpack.c.l.b16 %v264
    %v893 = vunpack.c.h.b16 %v264
    %v894 = vunpack.c.l.b16 %v265
    %v895 = vunpack.c.h.b16 %v265
    %v896 = vunpack.c.l.b16 %v266
    %v897 = vunpack.c.h.b16 %v266
    %v898 = vunpack.c.l.b16 %v267
    %v899 = vunpack.c.h.b16 %v267
    %v900 = vunpack.c.l.b16 %v268
    %v901 = vunpack.c.h.b16 %v268
    %v902 = vunpack.c.l.b16 %v269
    %v903 = vunpack.c.h.b16 %v269
    %v904 = vunpack.c.l.b16 %v270
    %v905 = vunpack.c.h.b16 %v270
    %v906 = vunpack.c.l.b16 %v271
    %v907 = vunpack.c.h.b16 %v271
    %v908 = vunpack.c.l.b16 %v272
    %v909 = vunpack.c.h.b16 %v272
    %v910 = vunpack.c.l.b16 %v273
    %v911 = vunpack.c.h.b16 %v273
    %v912 = vunpack.c.l.b16 %v274
    %v913 = vunpack.c.h.b16 %v274
    %v914 = vunpack.c.l.b16 %v275
    %v915 = vunpack.c.h.b16 %v275
    %v916 = vunpack.c.l.b16 %v276
    %v917 = vunpack.c.h.b16 %v276
    %v918 = vunpack.c.l.b16 %v277
    %v919 = vunpack.c.h.b16 %v277
    %v920 = vunpack.c.l.b16 %v278
    %v921 = vunpack.c.h.b16 %v278
    %v922 = vunpack.c.l.b16 %v279
    %v923 = vunpack.c.h.b16 %v279
    %v924 = vunpack.c.l.b16 %v280
    %v925 = vunpack.c.h.b16 %v280
    %v926 = vunpack.c.l.b16 %v281
    %v927 = vunpack.c.h.b16 %v281
    %v928 = vunpack.c.l.b16 %v282
    %v929 = vunpack.c.h.b16 %v282
    %v930 = vunpack.c.l.b16 %v283
    %v931 = vunpack.c.h.b16 %v283
    %v932 = vunpack.c.l.b16 %v284
    %v933 = vunpack.c.h.b16 %v284
    %v934 = vunpack.c.l.b16 %v285
    %v935 = vunpack.c.h.b16 %v285
    %v936 = vunpack.c.l.b16 %v286
    %v937 = vunpack.c.h.b16 %v286
    %v938 = vunpack.c.l.b16 %v287
    %v939 = vunpack.c.h.b16 %v287
    %v940 = vunpack.c.l.b16 %v288
    %v941 = vunpack.c.h.b16 %v288
    %v942 = vunpack.c.l.b16 %v289
    %v943 = vunpack.c.h.b16 %v289
    %v944 = vunpack.c.l.b16 %v290
    %v945 = vunpack.c.h.b16 %v290
    %v946 = vunpack.c.l.b16 %v291
    %v947 = vunpack.c.h.b16 %v291
    %v948 = vunpack.c.l.b16 %v292
    %v949 = vunpack.c.h.b16 %v292
    %v950 = vunpack.c.l.b16 %v293
    %v951 = vunpack.c.h.b16 %v293
    %v952 = vunpack.c.l.b16 %v294
    %v953 = vunpack.c.h.b16 %v294
    %v954 = vunpack.c.l.b16 %v295
    %v955 = vunpack.c.h.b16 %v295
    %v956 = vunpack.c.l.b16 %v296
    %v957 = vunpack.c.h.b16 %v296
    %v958 = vunpack.c.l.b16 %v297
    %v959 = vunpack.c.h.b16 %v297
    %v960 = vunpack.c.l.b16 %v298
    %v961 = vunpack.c.h.b16 %v298
    %v962 = vunpack.c.l.b16 %v299
    %v963 = vunpack.c.h.b16 %v299
    %v964 = vunpack.c.l.b16 %v300
    %v965 = vunpack.c.h.b16 %v300
    %v966 = vunpack.c.l.b16 %v301
    %v967 = vunpack.c.h.b16 %v301
    %v968 = vunpack.c.l.b16 %v302
    %v969 = vunpack.c.h.b16 %v302
    %v970 = vunpack.c.l.b16 %v303
    %v971 = vunpack.c.h.b16 %v303
    %v972 = vunpack.c.l.b16 %v304
    %v973 = vunpack.c.h.b16 %v304
    %v974 = vunpack.c.l.b16 %v305
    %v975 = vunpack.c.h.b16 %v305
    %v976 = vunpack.c.l.b16 %v306
    %v977 = vunpack.c.h.b16 %v306
    %v978 = vunpack.c.l.b16 %v307
    %v979 = vunpack.c.h.b16 %v307
    %v980 = vunpack.c.l.b16 %v308
    %v981 = vunpack.c.h.b16 %v308
    %v982 = vunpack.c.l.b16 %v309
    %v983 = vunpack.c.h.b16 %v309
    %v984 = vunpack.c.l.b16 %v310
    %v985 = vunpack.c.h.b16 %v310
    %v986 = vunpack.c.l.b16 %v311
    %v987 = vunpack.c.h.b16 %v311
    %v988 = vunpack.c.l.b16 %v312
    %v989 = vunpack.c.h.b16 %v312
    %v990 = vunpack.c.l.b16 %v313
    %v991 = vunpack.c.h.b16 %v313
    %v992 = vunpack.c.l.b16 %v314
    %v993 = vunpack.c.h.b16 %v314
    %v994 = vunpack.c.l.b16 %v315
    %v995 = vunpack.c.h.b16 %v315
    %v996 = vunpack.c.l.b16 %v316
    %v997 = vunpack.c.h.b16 %v316
    %v998 = vunpack.c.l.b16 %v317
    %v999 = vunpack.c.h.b16 %v317
    %v1000 = vunpack.c.l.b16 %v318
    %v1001 = vunpack.c.h.b16 %v318
    %v1002 = vunpack.c.l.b16 %v319
    %v1003 = vunpack.c.h.b16 %v319
    %v1004 = vunpack.c.l.b16 %v320
    %v1005 = vunpack.c.h.b16 %v320
    %v1006 = vunpack.c.l.b16 %v321
    %v1007 = vunpack.c.h.b16 %v321
    %v1008 = vunpack.c.l.b16 %v322
    %v1009 = vunpack.c.h.b16 %v322
    %v1010 = vunpack.c.l.b16 %v323
    %v1011 = vunpack.c.h.b16 %v323
    %v1012 = vunpack.c.l.b16 %v324
    %v1013 = vunpack.c.h.b16 %v324
    %v1014 = vunpack.c.l.b16 %v325
    %v1015 = vunpack.c.h.b16 %v325
    %v1016 = vunpack.c.l.b16 %v326
    %v1017 = vunpack.c.h.b16 %v326
    %v1018 = vunpack.c.l.b16 %v327
    %v1019 = vunpack.c.h.b16 %v327
    %v1020 = vunpack.c.l.b16 %v328
    %v1021 = vunpack.c.h.b16 %v328
    %v1022 = vunpack.c.l.b16 %v329
    %v1023 = vunpack.c.h.b16 %v329
    %v1024 = vpack.c.b16 %v580, %v576
    %v1025 = vpack.c.b16 %v581, %v577
    %v1026 = vpack.c.b16 %v582, %v578
    %v1027 = vpack.c.b16 %v583, %v579
    %v1028 = vpack.c.b16 %v588, %v584
    %v1029 = vpack.c.b16 %v589, %v585
    %v1030 = vpack.c.b16 %v590, %v586
    %v1031 = vpack.c.b16 %v591, %v587
    %v1032 = vpack.c.b16 %v596, %v592
    %v1033 = vpack.c.b16 %v597, %v593
    %v1034 = vpack.c.b16 %v598, %v594
    %v1035 = vpack.c.b16 %v599, %v595
    %v1036 = vpack.c.b16 %v604, %v600
    %v1037 = vpack.c.b16 %v605, %v601
    %v1038 = vpack.c.b16 %v606, %v602
    %v1039 = vpack.c.b16 %v607, %v603
    %v1040 = vpack.c.b16 %v612, %v608
    %v1041 = vpack.c.b16 %v613, %v609
    %v1042 = vpack.c.b16 %v614, %v610
    %v1043 = vpack.c.b16 %v615, %v611
    %v1044 = vpack.c.b16 %v620, %v616
    %v1045 = vpack.c.b16 %v621, %v617
    %v1046 = vpack.c.b16 %v622, %v618
    %v1047 = vpack.c.b16 %v623, %v619
    %v1048 = vpack.c.b16 %v628, %v624
    %v1049 = vpack.c.b16 %v629, %v625
    %v1050 = vpack.c.b16 %v630, %v626
    %v1051 = vpack.c.b16 %v631, %v627
    %v1052 = vpack.c.b16 %v636, %v632
    %v1053 = vpack.c.b16 %v637, %v633
    %v1054 = vpack.c.b16 %v638, %v634
    %v1055 = vpack.c.b16 %v639, %v635
    %v1056 = vpack.c.b16 %v644, %v640
    %v1057 = vpack.c.b16 %v645, %v641
    %v1058 = vpack.c.b16 %v646, %v642
    %v1059 = vpack.c.b16 %v647, %v643
    %v1060 = vpack.c.b16 %v652, %v648
    %v1061 = vpack.c.b16 %v653, %v649
    %v1062 = vpack.c.b16 %v654, %v650
    %v1063 = vpack.c.b16 %v655, %v651
    %v1064 = vpack.c.b16 %v660, %v656
    %v1065 = vpack.c.b16 %v661, %v657
    %v1066 = vpack.c.b16 %v662, %v658
    %v1067 = vpack.c.b16 %v663, %v659
    %v1068 = vpack.c.b16 %v668, %v664
    %v1069 = vpack.c.b16 %v669, %v665
    %v1070 = vpack.c.b16 %v670, %v666
    %v1071 = vpack.c.b16 %v671, %v667
    %v1072 = vpack.c.b16 %v676, %v672
    %v1073 = vpack.c.b16 %v677, %v673
    %v1074 = vpack.c.b16 %v678, %v674
    %v1075 = vpack.c.b16 %v679, %v675
    %v1076 = vpack.c.b16 %v684, %v680
    %v1077 = vpack.c.b16 %v685, %v681
    %v1078 = vpack.c.b16 %v686, %v682
    %v1079 = vpack.c.b16 %v687, %v683
    %v1080 = vpack.c.b16 %v692, %v688
    %v1081 = vpack.c.b16 %v693, %v689
    %v1082 = vpack.c.b16 %v694, %v690
    %v1083 = vpack.c.b16 %v695, %v691
    %v1084 = vpack.c.b16 %v700, %v696
    %v1085 = vpack.c.b16 %v701, %v697
    %v1086 = vpack.c.b16 %v702, %v698
    %v1087 = vpack.c.b16 %v703, %v699
    %v1088 = vpack.c.b16 %v708, %v704
    %v1089 = vpack.c.b16 %v709, %v705
    %v1090 = vpack.c.b16 %v710, %v706
    %v1091 = vpack.c.b16 %v711, %v707
    %v1092 = vpack.c.b16 %v716, %v712
    %v1093 = vpack.c.b16 %v717, %v713
    %v1094 = vpack.c.b16 %v718, %v714
    %v1095 = vpack.c.b16 %v719, %v715
    %v1096 = vpack.c.b16 %v724, %v720
    %v1097 = vpack.c.b16 %v725, %v721
    %v1098 = vpack.c.b16 %v726, %v722
    %v1099 = vpack.c.b16 %v727, %v723
    %v1100 = vpack.c.b16 %v732, %v728
    %v1101 = vpack.c.b16 %v733, %v729
    %v1102 = vpack.c.b16 %v734, %v730
    %v1103 = vpack.c.b16 %v735, %v731
    %v1104 = vpack.c.b16 %v740, %v736
    %v1105 = vpack.c.b16 %v741, %v737
    %v1106 = vpack.c.b16 %v742, %v738
    %v1107 = vpack.c.b16 %v743, %v739
    %v1108 = vpack.c.b16 %v748, %v744
    %v1109 = vpack.c.b16 %v749, %v745
    %v1110 = vpack.c.b16 %v750, %v746
    %v1111 = vpack.c.b16 %v751, %v747
    %v1112 = vpack.c.b16 %v756, %v752
    %v1113 = vpack.c.b16 %v757, %v753
    %v1114 = vpack.c.b16 %v758, %v754
    %v1115 = vpack.c.b16 %v759, %v755
    %v1116 = vpack.c.b16 %v764, %v760
    %v1117 = vpack.c.b16 %v765, %v761
    %v1118 = vpack.c.b16 %v766, %v762
    %v1119 = vpack.c.b16 %v767, %v763
    %v1120 = vpack.c.b16 %v772, %v768
    %v1121 = vpack.c.b16 %v773, %v769
    %v1122 = vpack.c.b16 %v774, %v770
    %v1123 = vpack.c.b16 %v775, %v771
    %v1124 = vpack.c.b16 %v780, %v776
    %v1125 = vpack.c.b16 %v781, %v777
    %v1126 = vpack.c.b16 %v782, %v778
    %v1127 = vpack.c.b16 %v783, %v779
    %v1128 = vpack.c.b16 %v788, %v784
    %v1129 = vpack.c.b16 %v789, %v785
    %v1130 = vpack.c.b16 %v790, %v786
    %v1131 = vpack.c.b16 %v791, %v787
    %v1132 = vpack.c.b16 %v796, %v792
    %v1133 = vpack.c.b16 %v797, %v793
    %v1134 = vpack.c.b16 %v798, %v794
    %v1135 = vpack.c.b16 %v799, %v795
    %v1136 = vpack.c.b16 %v804, %v800
    %v1137 = vpack.c.b16 %v805, %v801
    %v1138 = vpack.c.b16 %v806, %v802
    %v1139 = vpack.c.b16 %v807, %v803
    %v1140 = vpack.c.b16 %v812, %v808
    %v1141 = vpack.c.b16 %v813, %v809
    %v1142 = vpack.c.b16 %v814, %v810
    %v1143 = vpack.c.b16 %v815, %v811
    %v1144 = vpack.c.b16 %v820, %v816
    %v1145 = vpack.c.b16 %v821, %v817
    %v1146 = vpack.c.b16 %v822, %v818
    %v1147 = vpack.c.b16 %v823, %v819
    %v1148 = vpack.c.b16 %v828, %v824
    %v1149 = vpack.c.b16 %v829, %v825
    %v1150 = vpack.c.b16 %v830, %v826
    %v1151 = vpack.c.b16 %v831, %v827
    %v1152 = vpack.c.b16 %v836, %v832
    %v1153 = vpack.c.b16 %v837, %v833
    %v1154 = vpack.c.b16 %v838, %v834
    %v1155 = vpack.c.b16 %v839, %v835
    %v1156 = vpack.c.b16 %v844, %v840
    %v1157 = vpack.c.b16 %v845, %v841
    %v1158 = vpack.c.b16 %v846, %v842
    %v1159 = vpack.c.b16 %v847, %v843
    %v1160 = vpack.c.b16 %v852, %v848
    %v1161 = vpack.c.b16 %v853, %v849
    %v1162 = vpack.c.b16 %v854, %v850
    %v1163 = vpack.c.b16 %v855, %v851
    %v1164 = vpack.c.b16 %v860, %v856
    %v1165 = vpack.c.b16 %v861, %v857
    %v1166 = vpack.c.b16 %v862, %v858
    %v1167 = vpack.c.b16 %v863, %v859
    %v1168 = vpack.c.b16 %v868, %v864
    %v1169 = vpack.c.b16 %v869, %v865
    %v1170 = vpack.c.b16 %v870, %v866
    %v1171 = vpack.c.b16 %v871, %v867
    %v1172 = vpack.c.b16 %v876, %v872
    %v1173 = vpack.c.b16 %v877, %v873
    %v1174 = vpack.c.b16 %v878, %v874
    %v1175 = vpack.c.b16 %v879, %v875
    %v1176 = vpack.c.b16 %v884, %v880
    %v1177 = vpack.c.b16 %v885, %v881
    %v1178 = vpack.c.b16 %v886, %v882
    %v1179 = vpack.c.b16 %v887, %v883
    %v1180 = vpack.c.b16 %v892, %v888
    %v1181 = vpack.c.b16 %v893, %v889
    %v1182 = vpack.c.b16 %v894, %v890
    %v1183 = vpack.c.b16 %v895, %v891
    %v1184 = vpack.c.b16 %v900, %v896
    %v1185 = vpack.c.b16 %v901, %v897
    %v1186 = vpack.c.b16 %v902, %v898
    %v1187 = vpack.c.b16 %v903, %v899
    %v1188 = vpack.c.b16 %v908, %v904
    %v1189 = vpack.c.b16 %v909, %v905
    %v1190 = vpack.c.b16 %v910, %v906
    %v1191 = vpack.c.b16 %v911, %v907
    %v1192 = vpack.c.b16 %v916, %v912
    %v1193 = vpack.c.b16 %v917, %v913
    %v1194 = vpack.c.b16 %v918, %v914
    %v1195 = vpack.c.b16 %v919, %v915
    %v1196 = vpack.c.b16 %v924, %v920
    %v1197 = vpack.c.b16 %v925, %v921
    %v1198 = vpack.c.b16 %v926, %v922
    %v1199 = vpack.c.b16 %v927, %v923
    %v1200 = vpack.c.b16 %v932, %v928
    %v1201 = vpack.c.b16 %v933, %v929
    %v1202 = vpack.c.b16 %v934, %v930
    %v1203 = vpack.c.b16 %v935, %v931
    %v1204 = vpack.c.b16 %v940, %v936
    %v1205 = vpack.c.b16 %v941, %v937
    %v1206 = vpack.c.b16 %v942, %v938
    %v1207 = vpack.c.b16 %v943, %v939
    %v1208 = vpack.c.b16 %v948, %v944
    %v1209 = vpack.c.b16 %v949, %v945
    %v1210 = vpack.c.b16 %v950, %v946
    %v1211 = vpack.c.b16 %v951, %v947
    %v1212 = vpack.c.b16 %v956, %v952
    %v1213 = vpack.c.b16 %v957, %v953
    %v1214 = vpack.c.b16 %v958, %v954
    %v1215 = vpack.c.b16 %v959, %v955
    %v1216 = vpack.c.b16 %v964, %v960
    %v1217 = vpack.c.b16 %v965, %v961
    %v1218 = vpack.c.b16 %v966, %v962
    %v1219 = vpack.c.b16 %v967, %v963
    %v1220 = vpack.c.b16 %v972, %v968
    %v1221 = vpack.c.b16 %v973, %v969
    %v1222 = vpack.c.b16 %v974, %v970
    %v1223 = vpack.c.b16 %v975, %v971
    %v1224 = vpack.c.b16 %v980, %v976
    %v1225 = vpack.c.b16 %v981, %v977
    %v1226 = vpack.c.b16 %v982, %v978
    %v1227 = vpack.c.b16 %v983, %v979
    %v1228 = vpack.c.b16 %v988, %v984
    %v1229 = vpack.c.b16 %v989, %v985
    %v1230 = vpack.c.b16 %v990, %v986
    %v1231 = vpack.c.b16 %v991, %v987
    %v1232 = vpack.c.b16 %v996, %v992
    %v1233 = vpack.c.b16 %v997, %v993
    %v1234 = vpack.c.b16 %v998, %v994
    %v1235 = vpack.c.b16 %v999, %v995
    %v1236 = vpack.c.b16 %v1004, %v1000
    %v1237 = vpack.c.b16 %v1005, %v1001
    %v1238 = vpack.c.b16 %v1006, %v1002
    %v1239 = vpack.c.b16 %v1007, %v1003
    %v1240 = vpack.c.b16 %v1012, %v1008
    %v1241 = vpack.c.b16 %v1013, %v1009
    %v1242 = vpack.c.b16 %v1014, %v1010
    %v1243 = vpack.c.b16 %v1015, %v1011
    %v1244 = vpack.c.b16 %v1020, %v1016
    %v1245 = vpack.c.b16 %v1021, %v1017
    %v1246 = vpack.c.b16 %v1022, %v1018
    %v1247 = vpack.c.b16 %v1023, %v1019
    %1472 = vmatprep.subr.bf16.mxu0 %v1053
    %1473 = vmatpush1.bf16.msra.mxu0 %v1052
    %1474 = vmatprep.subr.bf16.mxu0 %v1049
    %1475 = vmatpush1.bf16.msra.mxu0 %v1048
    %1476 = vmatprep.subr.bf16.mxu0 %v1045
    %1477 = vmatpush1.bf16.msra.mxu0 %v1044
    %1478 = vmatprep.subr.bf16.mxu0 %v1041
    %1479 = vmatpush1.bf16.msra.mxu0 %v1040
    %1480 = vmatprep.subr.bf16.mxu0 %v1037
    %1481 = vmatpush1.bf16.msra.mxu0 %v1036
    %1482 = vmatprep.subr.bf16.mxu0 %v1033
    %1483 = vmatpush1.bf16.msra.mxu0 %v1032
    %1484 = vmatprep.subr.bf16.mxu0 %v1029
    %1485 = vmatpush1.bf16.msra.mxu0 %v1028
    %1486 = vmatprep.subr.bf16.mxu0 %v1025
    %1487 = vmatpush1.bf16.msra.mxu0 %v1024
    %1488 = vmatprep.subr.bf16.mxu0 %v1085
    %1489 = vmatpush2.bf16.msra.mxu0 %v1084
    %1490 = vmatprep.subr.bf16.mxu0 %v1081
    %1491 = vmatpush2.bf16.msra.mxu0 %v1080
    %1492 = vmatprep.subr.bf16.mxu0 %v1077
    %1493 = vmatpush2.bf16.msra.mxu0 %v1076
    %1494 = vmatprep.subr.bf16.mxu0 %v1073
    %1495 = vmatpush2.bf16.msra.mxu0 %v1072
    %1496 = vmatprep.subr.bf16.mxu0 %v1069
    %1497 = vmatpush2.bf16.msra.mxu0 %v1068
    %1498 = vmatprep.subr.bf16.mxu0 %v1065
    %1499 = vmatpush2.bf16.msra.mxu0 %v1064
    %1500 = vmatprep.subr.bf16.mxu0 %v1061
    %1501 = vmatpush2.bf16.msra.mxu0 %v1060
    %1502 = vmatprep.subr.bf16.mxu0 %v1057
    %1503 = vmatpush2.bf16.msra.mxu0 %v1056
    %1504 = vmatprep.mubr.bf16.mxu0 %v100
    %1505 = vmatmul.mubr.bf16.gmra.mxu0 %v99
    %v1506 = vpop.f32.mrf.mxu0
    %v1507 = vadd.f32 %v335, %v1506
    %v1508 = vpop.f32.mrf.mxu0
    %v1509 = vadd.f32 %v339, %v1508
    %v1510 = vpop.f32.mrf.mxu0
    %v1511 = vpop.f32.mrf.mxu0
    %1512 = vdwg.mxu0
    %1513 = vmatprep.subr.bf16.mxu0 %v1117
    %1514 = vmatpush1.bf16.msra.mxu0 %v1116
    %1515 = vmatprep.subr.bf16.mxu0 %v1113
    %1516 = vmatpush1.bf16.msra.mxu0 %v1112
    %1517 = vmatprep.subr.bf16.mxu0 %v1109
    %1518 = vmatpush1.bf16.msra.mxu0 %v1108
    %1519 = vmatprep.subr.bf16.mxu0 %v1105
    %1520 = vmatpush1.bf16.msra.mxu0 %v1104
    %1521 = vmatprep.subr.bf16.mxu0 %v1101
    %1522 = vmatpush1.bf16.msra.mxu0 %v1100
    %1523 = vmatprep.subr.bf16.mxu0 %v1097
    %1524 = vmatpush1.bf16.msra.mxu0 %v1096
    %1525 = vmatprep.subr.bf16.mxu0 %v1093
    %1526 = vmatpush1.bf16.msra.mxu0 %v1092
    %1527 = vmatprep.subr.bf16.mxu0 %v1089
    %1528 = vmatpush1.bf16.msra.mxu0 %v1088
    %1529 = vmatprep.subr.bf16.mxu0 %v1149
    %1530 = vmatpush2.bf16.msra.mxu0 %v1148
    %1531 = vmatprep.subr.bf16.mxu0 %v1145
    %1532 = vmatpush2.bf16.msra.mxu0 %v1144
    %1533 = vmatprep.subr.bf16.mxu0 %v1141
    %1534 = vmatpush2.bf16.msra.mxu0 %v1140
    %1535 = vmatprep.subr.bf16.mxu0 %v1137
    %1536 = vmatpush2.bf16.msra.mxu0 %v1136
    %1537 = vmatprep.subr.bf16.mxu0 %v1133
    %1538 = vmatpush2.bf16.msra.mxu0 %v1132
    %1539 = vmatprep.subr.bf16.mxu0 %v1129
    %1540 = vmatpush2.bf16.msra.mxu0 %v1128
    %1541 = vmatprep.subr.bf16.mxu0 %v1125
    %1542 = vmatpush2.bf16.msra.mxu0 %v1124
    %1543 = vmatprep.subr.bf16.mxu0 %v1121
    %1544 = vmatpush2.bf16.msra.mxu0 %v1120
    %1545 = vmatprep.mubr.bf16.mxu0 %v102
    %1546 = vmatmul.mubr.bf16.gmra.mxu0 %v101
    %v1547 = vpop.f32.mrf.mxu0
    %v1548 = vadd.f32 %v1507, %v1547
    %v1549 = vpop.f32.mrf.mxu0
    %v1550 = vadd.f32 %v1509, %v1549
    %v1551 = vpop.f32.mrf.mxu0
    %v1552 = vpop.f32.mrf.mxu0
    %1553 = vdwg.mxu0
    %1554 = vmatprep.subr.bf16.mxu0 %v1181
    %1555 = vmatpush1.bf16.msra.mxu0 %v1180
    %1556 = vmatprep.subr.bf16.mxu0 %v1177
    %1557 = vmatpush1.bf16.msra.mxu0 %v1176
    %1558 = vmatprep.subr.bf16.mxu0 %v1173
    %1559 = vmatpush1.bf16.msra.mxu0 %v1172
    %1560 = vmatprep.subr.bf16.mxu0 %v1169
    %1561 = vmatpush1.bf16.msra.mxu0 %v1168
    %1562 = vmatprep.subr.bf16.mxu0 %v1165
    %1563 = vmatpush1.bf16.msra.mxu0 %v1164
    %1564 = vmatprep.subr.bf16.mxu0 %v1161
    %1565 = vmatpush1.bf16.msra.mxu0 %v1160
    %1566 = vmatprep.subr.bf16.mxu0 %v1157
    %1567 = vmatpush1.bf16.msra.mxu0 %v1156
    %1568 = vmatprep.subr.bf16.mxu0 %v1153
    %1569 = vmatpush1.bf16.msra.mxu0 %v1152
    %1570 = vmatprep.subr.bf16.mxu0 %v1213
    %1571 = vmatpush2.bf16.msra.mxu0 %v1212
    %1572 = vmatprep.subr.bf16.mxu0 %v1209
    %1573 = vmatpush2.bf16.msra.mxu0 %v1208
    %1574 = vmatprep.subr.bf16.mxu0 %v1205
    %1575 = vmatpush2.bf16.msra.mxu0 %v1204
    %1576 = vmatprep.subr.bf16.mxu0 %v1201
    %1577 = vmatpush2.bf16.msra.mxu0 %v1200
    %1578 = vmatprep.subr.bf16.mxu0 %v1197
    %1579 = vmatpush2.bf16.msra.mxu0 %v1196
    %1580 = vmatprep.subr.bf16.mxu0 %v1193
    %1581 = vmatpush2.bf16.msra.mxu0 %v1192
    %1582 = vmatprep.subr.bf16.mxu0 %v1189
    %1583 = vmatpush2.bf16.msra.mxu0 %v1188
    %1584 = vmatprep.subr.bf16.mxu0 %v1185
    %1585 = vmatpush2.bf16.msra.mxu0 %v1184
    %1586 = vmatprep.mubr.bf16.mxu0 %v104
    %1587 = vmatmul.mubr.bf16.gmra.mxu0 %v103
    %v1588 = vpop.f32.mrf.mxu0
    %v1589 = vadd.f32 %v1548, %v1588
    %v1590 = vpop.f32.mrf.mxu0
    %v1591 = vadd.f32 %v1550, %v1590
    %v1592 = vpop.f32.mrf.mxu0
    %v1593 = vpop.f32.mrf.mxu0
    %1594 = vdwg.mxu0
    %1595 = vmatprep.subr.bf16.mxu0 %v1245
    %1596 = vmatpush1.bf16.msra.mxu0 %v1244
    %1597 = vmatprep.subr.bf16.mxu0 %v1241
    %1598 = vmatpush1.bf16.msra.mxu0 %v1240
    %1599 = vmatprep.subr.bf16.mxu0 %v1237
    %1600 = vmatpush1.bf16.msra.mxu0 %v1236
    %1601 = vmatprep.subr.bf16.mxu0 %v1233
    %1602 = vmatpush1.bf16.msra.mxu0 %v1232
    %1603 = vmatprep.subr.bf16.mxu0 %v1229
    %1604 = vmatpush1.bf16.msra.mxu0 %v1228
    %1605 = vmatprep.subr.bf16.mxu0 %v1225
    %1606 = vmatpush1.bf16.msra.mxu0 %v1224
    %1607 = vmatprep.subr.bf16.mxu0 %v1221
    %1608 = vmatpush1.bf16.msra.mxu0 %v1220
    %1609 = vmatprep.subr.bf16.mxu0 %v1217
    %1610 = vmatpush1.bf16.msra.mxu0 %v1216
    %1611 = vmatprep.subr.bf16.mxu0 0
    %1612 = vmatpush2.bf16.msra.mxu0 0
    %1613 = vmatprep.subr.bf16.mxu0 0
    %1614 = vmatpush2.bf16.msra.mxu0 0
    %1615 = vmatprep.subr.bf16.mxu0 0
    %1616 = vmatpush2.bf16.msra.mxu0 0
    %1617 = vmatprep.subr.bf16.mxu0 0
    %1618 = vmatpush2.bf16.msra.mxu0 0
    %1619 = vmatprep.subr.bf16.mxu0 0
    %1620 = vmatpush2.bf16.msra.mxu0 0
    %1621 = vmatprep.subr.bf16.mxu0 0
    %1622 = vmatpush2.bf16.msra.mxu0 0
    %1623 = vmatprep.subr.bf16.mxu0 0
    %1624 = vmatpush2.bf16.msra.mxu0 0
    %1625 = vmatprep.subr.bf16.mxu0 0
    %1626 = vmatpush2.bf16.msra.mxu0 0
    %1627 = vmatprep.mubr.bf16.mxu0 0
    %1628 = vmatmul.mubr.bf16.gmra.mxu0 %v105
    %v1629 = vpop.f32.mrf.mxu0
    %v1630 = vadd.f32 %v1589, %v1629
    %v1631 = vpop.f32.mrf.mxu0
    %v1632 = vadd.f32 %v1591, %v1631
    %v1633 = vpop.f32.mrf.mxu0
    %v1634 = vpop.f32.mrf.mxu0
    %1635 = vdwg.mxu0
    %1636 = vmatprep.subr.bf16.mxu0 %v1055
    %1637 = vmatpush1.bf16.msra.mxu0 %v1054
    %1638 = vmatprep.subr.bf16.mxu0 %v1051
    %1639 = vmatpush1.bf16.msra.mxu0 %v1050
    %1640 = vmatprep.subr.bf16.mxu0 %v1047
    %1641 = vmatpush1.bf16.msra.mxu0 %v1046
    %1642 = vmatprep.subr.bf16.mxu0 %v1043
    %1643 = vmatpush1.bf16.msra.mxu0 %v1042
    %1644 = vmatprep.subr.bf16.mxu0 %v1039
    %1645 = vmatpush1.bf16.msra.mxu0 %v1038
    %1646 = vmatprep.subr.bf16.mxu0 %v1035
    %1647 = vmatpush1.bf16.msra.mxu0 %v1034
    %1648 = vmatprep.subr.bf16.mxu0 %v1031
    %1649 = vmatpush1.bf16.msra.mxu0 %v1030
    %1650 = vmatprep.subr.bf16.mxu0 %v1027
    %1651 = vmatpush1.bf16.msra.mxu0 %v1026
    %1652 = vmatprep.subr.bf16.mxu0 %v1087
    %1653 = vmatpush2.bf16.msra.mxu0 %v1086
    %1654 = vmatprep.subr.bf16.mxu0 %v1083
    %1655 = vmatpush2.bf16.msra.mxu0 %v1082
    %1656 = vmatprep.subr.bf16.mxu0 %v1079
    %1657 = vmatpush2.bf16.msra.mxu0 %v1078
    %1658 = vmatprep.subr.bf16.mxu0 %v1075
    %1659 = vmatpush2.bf16.msra.mxu0 %v1074
    %1660 = vmatprep.subr.bf16.mxu0 %v1071
    %1661 = vmatpush2.bf16.msra.mxu0 %v1070
    %1662 = vmatprep.subr.bf16.mxu0 %v1067
    %1663 = vmatpush2.bf16.msra.mxu0 %v1066
    %1664 = vmatprep.subr.bf16.mxu0 %v1063
    %1665 = vmatpush2.bf16.msra.mxu0 %v1062
    %1666 = vmatprep.subr.bf16.mxu0 %v1059
    %1667 = vmatpush2.bf16.msra.mxu0 %v1058
    %1668 = vmatprep.mubr.bf16.mxu0 %v100
    %1669 = vmatmul.mubr.bf16.gmra.mxu0 %v99
    %v1670 = vpop.f32.mrf.mxu0
    %v1671 = vadd.f32 %v343, %v1670
    %v1672 = vpop.f32.mrf.mxu0
    %v1673 = vadd.f32 %v347, %v1672
    %v1674 = vpop.f32.mrf.mxu0
    %v1675 = vpop.f32.mrf.mxu0
    %1676 = vdwg.mxu0
    %1677 = vmatprep.subr.bf16.mxu0 %v1119
    %1678 = vmatpush1.bf16.msra.mxu0 %v1118
    %1679 = vmatprep.subr.bf16.mxu0 %v1115
    %1680 = vmatpush1.bf16.msra.mxu0 %v1114
    %1681 = vmatprep.subr.bf16.mxu0 %v1111
    %1682 = vmatpush1.bf16.msra.mxu0 %v1110
    %1683 = vmatprep.subr.bf16.mxu0 %v1107
    %1684 = vmatpush1.bf16.msra.mxu0 %v1106
    %1685 = vmatprep.subr.bf16.mxu0 %v1103
    %1686 = vmatpush1.bf16.msra.mxu0 %v1102
    %1687 = vmatprep.subr.bf16.mxu0 %v1099
    %1688 = vmatpush1.bf16.msra.mxu0 %v1098
    %1689 = vmatprep.subr.bf16.mxu0 %v1095
    %1690 = vmatpush1.bf16.msra.mxu0 %v1094
    %1691 = vmatprep.subr.bf16.mxu0 %v1091
    %1692 = vmatpush1.bf16.msra.mxu0 %v1090
    %1693 = vmatprep.subr.bf16.mxu0 %v1151
    %1694 = vmatpush2.bf16.msra.mxu0 %v1150
    %1695 = vmatprep.subr.bf16.mxu0 %v1147
    %1696 = vmatpush2.bf16.msra.mxu0 %v1146
    %1697 = vmatprep.subr.bf16.mxu0 %v1143
    %1698 = vmatpush2.bf16.msra.mxu0 %v1142
    %1699 = vmatprep.subr.bf16.mxu0 %v1139
    %1700 = vmatpush2.bf16.msra.mxu0 %v1138
    %1701 = vmatprep.subr.bf16.mxu0 %v1135
    %1702 = vmatpush2.bf16.msra.mxu0 %v1134
    %1703 = vmatprep.subr.bf16.mxu0 %v1131
    %1704 = vmatpush2.bf16.msra.mxu0 %v1130
    %1705 = vmatprep.subr.bf16.mxu0 %v1127
    %1706 = vmatpush2.bf16.msra.mxu0 %v1126
    %1707 = vmatprep.subr.bf16.mxu0 %v1123
    %1708 = vmatpush2.bf16.msra.mxu0 %v1122
    %1709 = vmatprep.mubr.bf16.mxu0 %v102
    %1710 = vmatmul.mubr.bf16.gmra.mxu0 %v101
    %v1711 = vpop.f32.mrf.mxu0
    %v1712 = vadd.f32 %v1671, %v1711
    %v1713 = vpop.f32.mrf.mxu0
    %v1714 = vadd.f32 %v1673, %v1713
    %v1715 = vpop.f32.mrf.mxu0
    %v1716 = vpop.f32.mrf.mxu0
    %1717 = vdwg.mxu0
    %1718 = vmatprep.subr.bf16.mxu0 %v1183
    %1719 = vmatpush1.bf16.msra.mxu0 %v1182
    %1720 = vmatprep.subr.bf16.mxu0 %v1179
    %1721 = vmatpush1.bf16.msra.mxu0 %v1178
    %1722 = vmatprep.subr.bf16.mxu0 %v1175
    %1723 = vmatpush1.bf16.msra.mxu0 %v1174
    %1724 = vmatprep.subr.bf16.mxu0 %v1171
    %1725 = vmatpush1.bf16.msra.mxu0 %v1170
    %1726 = vmatprep.subr.bf16.mxu0 %v1167
    %1727 = vmatpush1.bf16.msra.mxu0 %v1166
    %1728 = vmatprep.subr.bf16.mxu0 %v1163
    %1729 = vmatpush1.bf16.msra.mxu0 %v1162
    %1730 = vmatprep.subr.bf16.mxu0 %v1159
    %1731 = vmatpush1.bf16.msra.mxu0 %v1158
    %1732 = vmatprep.subr.bf16.mxu0 %v1155
    %1733 = vmatpush1.bf16.msra.mxu0 %v1154
    %1734 = vmatprep.subr.bf16.mxu0 %v1215
    %1735 = vmatpush2.bf16.msra.mxu0 %v1214
    %1736 = vmatprep.subr.bf16.mxu0 %v1211
    %1737 = vmatpush2.bf16.msra.mxu0 %v1210
    %1738 = vmatprep.subr.bf16.mxu0 %v1207
    %1739 = vmatpush2.bf16.msra.mxu0 %v1206
    %1740 = vmatprep.subr.bf16.mxu0 %v1203
    %1741 = vmatpush2.bf16.msra.mxu0 %v1202
    %1742 = vmatprep.subr.bf16.mxu0 %v1199
    %1743 = vmatpush2.bf16.msra.mxu0 %v1198
    %1744 = vmatprep.subr.bf16.mxu0 %v1195
    %1745 = vmatpush2.bf16.msra.mxu0 %v1194
    %1746 = vmatprep.subr.bf16.mxu0 %v1191
    %1747 = vmatpush2.bf16.msra.mxu0 %v1190
    %1748 = vmatprep.subr.bf16.mxu0 %v1187
    %1749 = vmatpush2.bf16.msra.mxu0 %v1186
    %1750 = vmatprep.mubr.bf16.mxu0 %v104
    %1751 = vmatmul.mubr.bf16.gmra.mxu0 %v103
    %v1752 = vpop.f32.mrf.mxu0
    %v1753 = vadd.f32 %v1712, %v1752
    %v1754 = vpop.f32.mrf.mxu0
    %v1755 = vadd.f32 %v1714, %v1754
    %v1756 = vpop.f32.mrf.mxu0
    %v1757 = vpop.f32.mrf.mxu0
    %1758 = vdwg.mxu0
    %1759 = vmatprep.subr.bf16.mxu0 %v1247
    %1760 = vmatpush1.bf16.msra.mxu0 %v1246
    %1761 = vmatprep.subr.bf16.mxu0 %v1243
    %1762 = vmatpush1.bf16.msra.mxu0 %v1242
    %1763 = vmatprep.subr.bf16.mxu0 %v1239
    %1764 = vmatpush1.bf16.msra.mxu0 %v1238
    %1765 = vmatprep.subr.bf16.mxu0 %v1235
    %1766 = vmatpush1.bf16.msra.mxu0 %v1234
    %1767 = vmatprep.subr.bf16.mxu0 %v1231
    %1768 = vmatpush1.bf16.msra.mxu0 %v1230
    %1769 = vmatprep.subr.bf16.mxu0 %v1227
    %1770 = vmatpush1.bf16.msra.mxu0 %v1226
    %1771 = vmatprep.subr.bf16.mxu0 %v1223
    %1772 = vmatpush1.bf16.msra.mxu0 %v1222
    %1773 = vmatprep.subr.bf16.mxu0 %v1219
    %1774 = vmatpush1.bf16.msra.mxu0 %v1218
    %1775 = vmatprep.subr.bf16.mxu0 0
    %1776 = vmatpush2.bf16.msra.mxu0 0
    %1777 = vmatprep.subr.bf16.mxu0 0
    %1778 = vmatpush2.bf16.msra.mxu0 0
    %1779 = vmatprep.subr.bf16.mxu0 0
    %1780 = vmatpush2.bf16.msra.mxu0 0
    %1781 = vmatprep.subr.bf16.mxu0 0
    %1782 = vmatpush2.bf16.msra.mxu0 0
    %1783 = vmatprep.subr.bf16.mxu0 0
    %1784 = vmatpush2.bf16.msra.mxu0 0
    %1785 = vmatprep.subr.bf16.mxu0 0
    %1786 = vmatpush2.bf16.msra.mxu0 0
    %1787 = vmatprep.subr.bf16.mxu0 0
    %1788 = vmatpush2.bf16.msra.mxu0 0
    %1789 = vmatprep.subr.bf16.mxu0 0
    %1790 = vmatpush2.bf16.msra.mxu0 0
    %1791 = vmatprep.mubr.bf16.mxu0 0
    %1792 = vmatmul.mubr.bf16.gmra.mxu0 %v105
    %v1793 = vpop.f32.mrf.mxu0
    %v1794 = vadd.f32 %v1753, %v1793
    %v1795 = vpop.f32.mrf.mxu0
    %v1796 = vadd.f32 %v1755, %v1795
    %v1797 = vpop.f32.mrf.mxu0
    %v1798 = vpop.f32.mrf.mxu0
    %1799 = vdwg.mxu0
    %vm1800 = vcmp.gt.f32.partialorder %v1630, 0.0
    %vm1801 = vcmp.gt.f32.partialorder %v1632, 0.0
    %vm1802 = vcmp.gt.f32.partialorder %v1794, 0.0
    %vm1803 = vcmp.gt.f32.partialorder %v1796, 0.0
    %v1804 = vmul.f32 %v1630, 0.2
    %v1805 = vmul.f32 %v1632, 0.2
    %v1806 = vmul.f32 %v1794, 0.2
    %v1807 = vmul.f32 %v1796, 0.2
    %v1808 = vsel %vm1800, %v1630, %v1804
    %v1809 = vsel %vm1801, %v1632, %v1805
    %v1810 = vsel %vm1802, %v1794, %v1806
    %v1811 = vsel %vm1803, %v1796, %v1807
    %v1812 = vpack.c.bf16 %v1808, %v1808
    %v1813 = vpack.c.bf16 %v1809, %v1809
    %v1814 = vpack.c.bf16 %v1810, %v1810
    %v1815 = vpack.c.bf16 %v1811, %v1811
    %v1816 = vld [vmem:[#allocation8] sm:$0xff]
    %v1817 = vld [vmem:[#allocation8 + $0x8] sm:$0xff]
    %v1818 = vld [vmem:[#allocation8 + $0x10] sm:$0xff]
    %v1819 = vld [vmem:[#allocation8 + $0x18] sm:$0xff]
    %v1820 = vld [vmem:[#allocation8 + $0x20] sm:$0xff]
    %v1821 = vld [vmem:[#allocation8 + $0x28] sm:$0xff]
    %v1822 = vld [vmem:[#allocation8 + $0x30] sm:$0xff]
    %v1823 = vld [vmem:[#allocation8 + $0x38] sm:$0xff]
    %v1824 = vld [vmem:[#allocation8 + $0x40] sm:$0xff]
    %v1825 = vld [vmem:[#allocation8 + $0x48] sm:$0xff]
    %v1826 = vld [vmem:[#allocation8 + $0x50] sm:$0xff]
    %v1827 = vld [vmem:[#allocation8 + $0x58] sm:$0xff]
    %v1828 = vld [vmem:[#allocation8 + $0x60] sm:$0xff]
    %v1829 = vld [vmem:[#allocation8 + $0x68] sm:$0xff]
    %v1830 = vld [vmem:[#allocation8 + $0x70] sm:$0xff]
    %v1831 = vld [vmem:[#allocation8 + $0x78] sm:$0xff]
    %v1832 = vld [vmem:[#allocation8 + $0x80] sm:$0xff]
    %v1833 = vld [vmem:[#allocation8 + $0x88] sm:$0xff]
    %v1834 = vld [vmem:[#allocation8 + $0x90] sm:$0xff]
    %v1835 = vld [vmem:[#allocation8 + $0x98] sm:$0xff]
    %v1836 = vld [vmem:[#allocation8 + $0xa0] sm:$0xff]
    %v1837 = vld [vmem:[#allocation8 + $0xa8] sm:$0xff]
    %v1838 = vld [vmem:[#allocation8 + $0xb0] sm:$0xff]
    %v1839 = vld [vmem:[#allocation8 + $0xb8] sm:$0xff]
    %v1840 = vld [vmem:[#allocation8 + $0xc0] sm:$0xff]
    %v1841 = vld [vmem:[#allocation8 + $0xc8] sm:$0xff]
    %v1842 = vld [vmem:[#allocation8 + $0xd0] sm:$0xff]
    %v1843 = vld [vmem:[#allocation8 + $0xd8] sm:$0xff]
    %v1844 = vld [vmem:[#allocation8 + $0xe0] sm:$0xff]
    %v1845 = vld [vmem:[#allocation8 + $0xe8] sm:$0xff]
    %v1846 = vld [vmem:[#allocation8 + $0xf0] sm:$0xff]
    %v1847 = vld [vmem:[#allocation8 + $0xf8] sm:$0xff]
    %v1848 = vld [vmem:[#allocation8 + $0x100] sm:$0xff]
    %v1849 = vld [vmem:[#allocation8 + $0x108] sm:$0xff]
    %v1850 = vld [vmem:[#allocation8 + $0x110] sm:$0xff]
    %v1851 = vld [vmem:[#allocation8 + $0x118] sm:$0xff]
    %v1852 = vld [vmem:[#allocation8 + $0x120] sm:$0xff]
    %v1853 = vld [vmem:[#allocation8 + $0x128] sm:$0xff]
    %v1854 = vld [vmem:[#allocation8 + $0x130] sm:$0xff]
    %v1855 = vld [vmem:[#allocation8 + $0x138] sm:$0xff]
    %v1856 = vld [vmem:[#allocation8 + $0x140] sm:$0xff]
    %v1857 = vld [vmem:[#allocation8 + $0x148] sm:$0xff]
    %v1858 = vld [vmem:[#allocation8 + $0x150] sm:$0xff]
    %v1859 = vld [vmem:[#allocation8 + $0x158] sm:$0xff]
    %v1860 = vld [vmem:[#allocation8 + $0x160] sm:$0xff]
    %v1861 = vld [vmem:[#allocation8 + $0x168] sm:$0xff]
    %v1862 = vld [vmem:[#allocation8 + $0x170] sm:$0xff]
    %v1863 = vld [vmem:[#allocation8 + $0x178] sm:$0xff]
    %v1864 = vld [vmem:[#allocation8 + $0x180] sm:$0xff]
    %v1865 = vld [vmem:[#allocation8 + $0x188] sm:$0xff]
    %v1866 = vld [vmem:[#allocation8 + $0x190] sm:$0xff]
    %v1867 = vld [vmem:[#allocation8 + $0x198] sm:$0xff]
    %v1868 = vld [vmem:[#allocation8 + $0x1a0] sm:$0xff]
    %v1869 = vld [vmem:[#allocation8 + $0x1a8] sm:$0xff]
    %v1870 = vld [vmem:[#allocation8 + $0x1b0] sm:$0xff]
    %v1871 = vld [vmem:[#allocation8 + $0x1b8] sm:$0xff]
    %v1872 = vld [vmem:[#allocation8 + $0x1c0] sm:$0xff]
    %v1873 = vld [vmem:[#allocation8 + $0x1c8] sm:$0xff]
    %v1874 = vld [vmem:[#allocation8 + $0x1d0] sm:$0xff]
    %v1875 = vld [vmem:[#allocation8 + $0x1d8] sm:$0xff]
    %v1876 = vld [vmem:[#allocation8 + $0x1e0] sm:$0xff]
    %v1877 = vld [vmem:[#allocation8 + $0x1e8] sm:$0xff]
    %v1878 = vld [vmem:[#allocation8 + $0x1f0] sm:$0xff]
    %v1879 = vld [vmem:[#allocation8 + $0x1f8] sm:$0xff]
    %v1880 = vld [vmem:[%s4] sm:$0x3]
    %v1882 = vlaneseq
    %v1883 = vshrl.u32 %v1882, 7
    %v1884 = vsub.s32 0, %v1883
    %v1885 = vrot.slane %v1880, %v1884
    %v1886 = vlaneseq
    %v1887 = vshrl.u32 %v1886, 7
    %v1888 = vsub.s32 1, %v1887
    %v1889 = vrot.slane %v1880, %v1888
    %v1956 = vunpack.c.l.b16 %v1816
    %v1957 = vunpack.c.h.b16 %v1816
    %v1958 = vunpack.c.l.b16 %v1817
    %v1959 = vunpack.c.h.b16 %v1817
    %v1960 = vunpack.c.l.b16 %v1818
    %v1961 = vunpack.c.h.b16 %v1818
    %v1962 = vunpack.c.l.b16 %v1819
    %v1963 = vunpack.c.h.b16 %v1819
    %v1964 = vunpack.c.l.b16 %v1820
    %v1965 = vunpack.c.h.b16 %v1820
    %v1966 = vunpack.c.l.b16 %v1821
    %v1967 = vunpack.c.h.b16 %v1821
    %v1968 = vunpack.c.l.b16 %v1822
    %v1969 = vunpack.c.h.b16 %v1822
    %v1970 = vunpack.c.l.b16 %v1823
    %v1971 = vunpack.c.h.b16 %v1823
    %v1972 = vunpack.c.l.b16 %v1824
    %v1973 = vunpack.c.h.b16 %v1824
    %v1974 = vunpack.c.l.b16 %v1825
    %v1975 = vunpack.c.h.b16 %v1825
    %v1976 = vunpack.c.l.b16 %v1826
    %v1977 = vunpack.c.h.b16 %v1826
    %v1978 = vunpack.c.l.b16 %v1827
    %v1979 = vunpack.c.h.b16 %v1827
    %v1980 = vunpack.c.l.b16 %v1828
    %v1981 = vunpack.c.h.b16 %v1828
    %v1982 = vunpack.c.l.b16 %v1829
    %v1983 = vunpack.c.h.b16 %v1829
    %v1984 = vunpack.c.l.b16 %v1830
    %v1985 = vunpack.c.h.b16 %v1830
    %v1986 = vunpack.c.l.b16 %v1831
    %v1987 = vunpack.c.h.b16 %v1831
    %v1988 = vunpack.c.l.b16 %v1832
    %v1989 = vunpack.c.h.b16 %v1832
    %v1990 = vunpack.c.l.b16 %v1833
    %v1991 = vunpack.c.h.b16 %v1833
    %v1992 = vunpack.c.l.b16 %v1834
    %v1993 = vunpack.c.h.b16 %v1834
    %v1994 = vunpack.c.l.b16 %v1835
    %v1995 = vunpack.c.h.b16 %v1835
    %v1996 = vunpack.c.l.b16 %v1836
    %v1997 = vunpack.c.h.b16 %v1836
    %v1998 = vunpack.c.l.b16 %v1837
    %v1999 = vunpack.c.h.b16 %v1837
    %v2000 = vunpack.c.l.b16 %v1838
    %v2001 = vunpack.c.h.b16 %v1838
    %v2002 = vunpack.c.l.b16 %v1839
    %v2003 = vunpack.c.h.b16 %v1839
    %v2004 = vunpack.c.l.b16 %v1840
    %v2005 = vunpack.c.h.b16 %v1840
    %v2006 = vunpack.c.l.b16 %v1841
    %v2007 = vunpack.c.h.b16 %v1841
    %v2008 = vunpack.c.l.b16 %v1842
    %v2009 = vunpack.c.h.b16 %v1842
    %v2010 = vunpack.c.l.b16 %v1843
    %v2011 = vunpack.c.h.b16 %v1843
    %v2012 = vunpack.c.l.b16 %v1844
    %v2013 = vunpack.c.h.b16 %v1844
    %v2014 = vunpack.c.l.b16 %v1845
    %v2015 = vunpack.c.h.b16 %v1845
    %v2016 = vunpack.c.l.b16 %v1846
    %v2017 = vunpack.c.h.b16 %v1846
    %v2018 = vunpack.c.l.b16 %v1847
    %v2019 = vunpack.c.h.b16 %v1847
    %v2020 = vunpack.c.l.b16 %v1848
    %v2021 = vunpack.c.h.b16 %v1848
    %v2022 = vunpack.c.l.b16 %v1849
    %v2023 = vunpack.c.h.b16 %v1849
    %v2024 = vunpack.c.l.b16 %v1850
    %v2025 = vunpack.c.h.b16 %v1850
    %v2026 = vunpack.c.l.b16 %v1851
    %v2027 = vunpack.c.h.b16 %v1851
    %v2028 = vunpack.c.l.b16 %v1852
    %v2029 = vunpack.c.h.b16 %v1852
    %v2030 = vunpack.c.l.b16 %v1853
    %v2031 = vunpack.c.h.b16 %v1853
    %v2032 = vunpack.c.l.b16 %v1854
    %v2033 = vunpack.c.h.b16 %v1854
    %v2034 = vunpack.c.l.b16 %v1855
    %v2035 = vunpack.c.h.b16 %v1855
    %v2036 = vunpack.c.l.b16 %v1856
    %v2037 = vunpack.c.h.b16 %v1856
    %v2038 = vunpack.c.l.b16 %v1857
    %v2039 = vunpack.c.h.b16 %v1857
    %v2040 = vunpack.c.l.b16 %v1858
    %v2041 = vunpack.c.h.b16 %v1858
    %v2042 = vunpack.c.l.b16 %v1859
    %v2043 = vunpack.c.h.b16 %v1859
    %v2044 = vunpack.c.l.b16 %v1860
    %v2045 = vunpack.c.h.b16 %v1860
    %v2046 = vunpack.c.l.b16 %v1861
    %v2047 = vunpack.c.h.b16 %v1861
    %v2048 = vunpack.c.l.b16 %v1862
    %v2049 = vunpack.c.h.b16 %v1862
    %v2050 = vunpack.c.l.b16 %v1863
    %v2051 = vunpack.c.h.b16 %v1863
    %v2052 = vunpack.c.l.b16 %v1864
    %v2053 = vunpack.c.h.b16 %v1864
    %v2054 = vunpack.c.l.b16 %v1865
    %v2055 = vunpack.c.h.b16 %v1865
    %v2056 = vunpack.c.l.b16 %v1866
    %v2057 = vunpack.c.h.b16 %v1866
    %v2058 = vunpack.c.l.b16 %v1867
    %v2059 = vunpack.c.h.b16 %v1867
    %v2060 = vunpack.c.l.b16 %v1868
    %v2061 = vunpack.c.h.b16 %v1868
    %v2062 = vunpack.c.l.b16 %v1869
    %v2063 = vunpack.c.h.b16 %v1869
    %v2064 = vunpack.c.l.b16 %v1870
    %v2065 = vunpack.c.h.b16 %v1870
    %v2066 = vunpack.c.l.b16 %v1871
    %v2067 = vunpack.c.h.b16 %v1871
    %v2068 = vunpack.c.l.b16 %v1872
    %v2069 = vunpack.c.h.b16 %v1872
    %v2070 = vunpack.c.l.b16 %v1873
    %v2071 = vunpack.c.h.b16 %v1873
    %v2072 = vunpack.c.l.b16 %v1874
    %v2073 = vunpack.c.h.b16 %v1874
    %v2074 = vunpack.c.l.b16 %v1875
    %v2075 = vunpack.c.h.b16 %v1875
    %v2076 = vunpack.c.l.b16 %v1876
    %v2077 = vunpack.c.h.b16 %v1876
    %v2078 = vunpack.c.l.b16 %v1877
    %v2079 = vunpack.c.h.b16 %v1877
    %v2080 = vunpack.c.l.b16 %v1878
    %v2081 = vunpack.c.h.b16 %v1878
    %v2082 = vunpack.c.l.b16 %v1879
    %v2083 = vunpack.c.h.b16 %v1879
    %v2084 = vpack.c.b16 %v1958, %v1956
    %v2085 = vpack.c.b16 %v1959, %v1957
    %v2086 = vpack.c.b16 %v1962, %v1960
    %v2087 = vpack.c.b16 %v1963, %v1961
    %v2088 = vpack.c.b16 %v1966, %v1964
    %v2089 = vpack.c.b16 %v1967, %v1965
    %v2090 = vpack.c.b16 %v1970, %v1968
    %v2091 = vpack.c.b16 %v1971, %v1969
    %v2092 = vpack.c.b16 %v1974, %v1972
    %v2093 = vpack.c.b16 %v1975, %v1973
    %v2094 = vpack.c.b16 %v1978, %v1976
    %v2095 = vpack.c.b16 %v1979, %v1977
    %v2096 = vpack.c.b16 %v1982, %v1980
    %v2097 = vpack.c.b16 %v1983, %v1981
    %v2098 = vpack.c.b16 %v1986, %v1984
    %v2099 = vpack.c.b16 %v1987, %v1985
    %v2100 = vpack.c.b16 %v1990, %v1988
    %v2101 = vpack.c.b16 %v1991, %v1989
    %v2102 = vpack.c.b16 %v1994, %v1992
    %v2103 = vpack.c.b16 %v1995, %v1993
    %v2104 = vpack.c.b16 %v1998, %v1996
    %v2105 = vpack.c.b16 %v1999, %v1997
    %v2106 = vpack.c.b16 %v2002, %v2000
    %v2107 = vpack.c.b16 %v2003, %v2001
    %v2108 = vpack.c.b16 %v2006, %v2004
    %v2109 = vpack.c.b16 %v2007, %v2005
    %v2110 = vpack.c.b16 %v2010, %v2008
    %v2111 = vpack.c.b16 %v2011, %v2009
    %v2112 = vpack.c.b16 %v2014, %v2012
    %v2113 = vpack.c.b16 %v2015, %v2013
    %v2114 = vpack.c.b16 %v2018, %v2016
    %v2115 = vpack.c.b16 %v2019, %v2017
    %v2116 = vpack.c.b16 %v2022, %v2020
    %v2117 = vpack.c.b16 %v2023, %v2021
    %v2118 = vpack.c.b16 %v2026, %v2024
    %v2119 = vpack.c.b16 %v2027, %v2025
    %v2120 = vpack.c.b16 %v2030, %v2028
    %v2121 = vpack.c.b16 %v2031, %v2029
    %v2122 = vpack.c.b16 %v2034, %v2032
    %v2123 = vpack.c.b16 %v2035, %v2033
    %v2124 = vpack.c.b16 %v2038, %v2036
    %v2125 = vpack.c.b16 %v2039, %v2037
    %v2126 = vpack.c.b16 %v2042, %v2040
    %v2127 = vpack.c.b16 %v2043, %v2041
    %v2128 = vpack.c.b16 %v2046, %v2044
    %v2129 = vpack.c.b16 %v2047, %v2045
    %v2130 = vpack.c.b16 %v2050, %v2048
    %v2131 = vpack.c.b16 %v2051, %v2049
    %v2132 = vpack.c.b16 %v2054, %v2052
    %v2133 = vpack.c.b16 %v2055, %v2053
    %v2134 = vpack.c.b16 %v2058, %v2056
    %v2135 = vpack.c.b16 %v2059, %v2057
    %v2136 = vpack.c.b16 %v2062, %v2060
    %v2137 = vpack.c.b16 %v2063, %v2061
    %v2138 = vpack.c.b16 %v2066, %v2064
    %v2139 = vpack.c.b16 %v2067, %v2065
    %v2140 = vpack.c.b16 %v2070, %v2068
    %v2141 = vpack.c.b16 %v2071, %v2069
    %v2142 = vpack.c.b16 %v2074, %v2072
    %v2143 = vpack.c.b16 %v2075, %v2073
    %v2144 = vpack.c.b16 %v2078, %v2076
    %v2145 = vpack.c.b16 %v2079, %v2077
    %v2146 = vpack.c.b16 %v2082, %v2080
    %v2147 = vpack.c.b16 %v2083, %v2081
    %2212 = vmatprep.subr.bf16.mxu0 %v2099
    %2213 = vmatpush1.bf16.msra.mxu0 %v2098
    %2214 = vmatprep.subr.bf16.mxu0 %v2097
    %2215 = vmatpush1.bf16.msra.mxu0 %v2096
    %2216 = vmatprep.subr.bf16.mxu0 %v2095
    %2217 = vmatpush1.bf16.msra.mxu0 %v2094
    %2218 = vmatprep.subr.bf16.mxu0 %v2093
    %2219 = vmatpush1.bf16.msra.mxu0 %v2092
    %2220 = vmatprep.subr.bf16.mxu0 %v2091
    %2221 = vmatpush1.bf16.msra.mxu0 %v2090
    %2222 = vmatprep.subr.bf16.mxu0 %v2089
    %2223 = vmatpush1.bf16.msra.mxu0 %v2088
    %2224 = vmatprep.subr.bf16.mxu0 %v2087
    %2225 = vmatpush1.bf16.msra.mxu0 %v2086
    %2226 = vmatprep.subr.bf16.mxu0 %v2085
    %2227 = vmatpush1.bf16.msra.mxu0 %v2084
    %2228 = vmatprep.subr.bf16.mxu0 %v2115
    %2229 = vmatpush2.bf16.msra.mxu0 %v2114
    %2230 = vmatprep.subr.bf16.mxu0 %v2113
    %2231 = vmatpush2.bf16.msra.mxu0 %v2112
    %2232 = vmatprep.subr.bf16.mxu0 %v2111
    %2233 = vmatpush2.bf16.msra.mxu0 %v2110
    %2234 = vmatprep.subr.bf16.mxu0 %v2109
    %2235 = vmatpush2.bf16.msra.mxu0 %v2108
    %2236 = vmatprep.subr.bf16.mxu0 %v2107
    %2237 = vmatpush2.bf16.msra.mxu0 %v2106
    %2238 = vmatprep.subr.bf16.mxu0 %v2105
    %2239 = vmatpush2.bf16.msra.mxu0 %v2104
    %2240 = vmatprep.subr.bf16.mxu0 %v2103
    %2241 = vmatpush2.bf16.msra.mxu0 %v2102
    %2242 = vmatprep.subr.bf16.mxu0 %v2101
    %2243 = vmatpush2.bf16.msra.mxu0 %v2100
    %2244 = vmatprep.mubr.bf16.mxu0 %v1813
    %2245 = vmatmul.mubr.bf16.gmra.mxu0 %v1812
    %v2246 = vpop.f32.mrf.mxu0
    %v2247 = vadd.f32 %v1885, %v2246
    %v2248 = vpop.f32.mrf.mxu0
    %v2249 = vadd.f32 %v1889, %v2248
    %v2250 = vpop.f32.mrf.mxu0
    %v2251 = vpop.f32.mrf.mxu0
    %2252 = vdwg.mxu0
    %2253 = vmatprep.subr.bf16.mxu0 %v2131
    %2254 = vmatpush1.bf16.msra.mxu0 %v2130
    %2255 = vmatprep.subr.bf16.mxu0 %v2129
    %2256 = vmatpush1.bf16.msra.mxu0 %v2128
    %2257 = vmatprep.subr.bf16.mxu0 %v2127
    %2258 = vmatpush1.bf16.msra.mxu0 %v2126
    %2259 = vmatprep.subr.bf16.mxu0 %v2125
    %2260 = vmatpush1.bf16.msra.mxu0 %v2124
    %2261 = vmatprep.subr.bf16.mxu0 %v2123
    %2262 = vmatpush1.bf16.msra.mxu0 %v2122
    %2263 = vmatprep.subr.bf16.mxu0 %v2121
    %2264 = vmatpush1.bf16.msra.mxu0 %v2120
    %2265 = vmatprep.subr.bf16.mxu0 %v2119
    %2266 = vmatpush1.bf16.msra.mxu0 %v2118
    %2267 = vmatprep.subr.bf16.mxu0 %v2117
    %2268 = vmatpush1.bf16.msra.mxu0 %v2116
    %2269 = vmatprep.subr.bf16.mxu0 %v2147
    %2270 = vmatpush2.bf16.msra.mxu0 %v2146
    %2271 = vmatprep.subr.bf16.mxu0 %v2145
    %2272 = vmatpush2.bf16.msra.mxu0 %v2144
    %2273 = vmatprep.subr.bf16.mxu0 %v2143
    %2274 = vmatpush2.bf16.msra.mxu0 %v2142
    %2275 = vmatprep.subr.bf16.mxu0 %v2141
    %2276 = vmatpush2.bf16.msra.mxu0 %v2140
    %2277 = vmatprep.subr.bf16.mxu0 %v2139
    %2278 = vmatpush2.bf16.msra.mxu0 %v2138
    %2279 = vmatprep.subr.bf16.mxu0 %v2137
    %2280 = vmatpush2.bf16.msra.mxu0 %v2136
    %2281 = vmatprep.subr.bf16.mxu0 %v2135
    %2282 = vmatpush2.bf16.msra.mxu0 %v2134
    %2283 = vmatprep.subr.bf16.mxu0 %v2133
    %2284 = vmatpush2.bf16.msra.mxu0 %v2132
    %2285 = vmatprep.mubr.bf16.mxu0 %v1815
    %2286 = vmatmul.mubr.bf16.gmra.mxu0 %v1814
    %v2287 = vpop.f32.mrf.mxu0
    %v2288 = vadd.f32 %v2247, %v2287
    %v2289 = vpop.f32.mrf.mxu0
    %v2290 = vadd.f32 %v2249, %v2289
    %v2291 = vpop.f32.mrf.mxu0
    %v2292 = vpop.f32.mrf.mxu0
    %2293 = vdwg.mxu0
    %vm2294 = vcmp.gt.f32.partialorder %v2288, 0.0
    %vm2295 = vcmp.gt.f32.partialorder %v2290, 0.0
    %v2296 = vmul.f32 %v2288, 0.2
    %v2297 = vmul.f32 %v2290, 0.2
    %v2298 = vsel %vm2294, %v2288, %v2296
    %v2299 = vsel %vm2295, %v2290, %v2297
    %v2300 = vpack.c.bf16 %v2298, %v2298
    %v2301 = vpack.c.bf16 %v2299, %v2299
    %v2302 = vld [vmem:[#allocation10] sm:$0xf]
    %v2303 = vld [vmem:[#allocation10 + $0x4] sm:$0xf]
    %v2304 = vld [vmem:[#allocation10 + $0x8] sm:$0xf]
    %v2305 = vld [vmem:[#allocation10 + $0xc] sm:$0xf]
    %v2306 = vld [vmem:[#allocation10 + $0x10] sm:$0xf]
    %v2307 = vld [vmem:[#allocation10 + $0x14] sm:$0xf]
    %v2308 = vld [vmem:[#allocation10 + $0x18] sm:$0xf]
    %v2309 = vld [vmem:[#allocation10 + $0x1c] sm:$0xf]
    %v2310 = vld [vmem:[#allocation10 + $0x20] sm:$0xf]
    %v2311 = vld [vmem:[#allocation10 + $0x24] sm:$0xf]
    %v2312 = vld [vmem:[#allocation10 + $0x28] sm:$0xf]
    %v2313 = vld [vmem:[#allocation10 + $0x2c] sm:$0xf]
    %v2314 = vld [vmem:[#allocation10 + $0x30] sm:$0xf]
    %v2315 = vld [vmem:[#allocation10 + $0x34] sm:$0xf]
    %v2316 = vld [vmem:[#allocation10 + $0x38] sm:$0xf]
    %v2317 = vld [vmem:[#allocation10 + $0x3c] sm:$0xf]
    %v2318 = vld [vmem:[#allocation10 + $0x40] sm:$0xf]
    %v2319 = vld [vmem:[#allocation10 + $0x44] sm:$0xf]
    %v2320 = vld [vmem:[#allocation10 + $0x48] sm:$0xf]
    %v2321 = vld [vmem:[#allocation10 + $0x4c] sm:$0xf]
    %v2322 = vld [vmem:[#allocation10 + $0x50] sm:$0xf]
    %v2323 = vld [vmem:[#allocation10 + $0x54] sm:$0xf]
    %v2324 = vld [vmem:[#allocation10 + $0x58] sm:$0xf]
    %v2325 = vld [vmem:[#allocation10 + $0x5c] sm:$0xf]
    %v2326 = vld [vmem:[#allocation10 + $0x60] sm:$0xf]
    %v2327 = vld [vmem:[#allocation10 + $0x64] sm:$0xf]
    %v2328 = vld [vmem:[#allocation10 + $0x68] sm:$0xf]
    %v2329 = vld [vmem:[#allocation10 + $0x6c] sm:$0xf]
    %v2330 = vld [vmem:[#allocation10 + $0x70] sm:$0xf]
    %v2331 = vld [vmem:[#allocation10 + $0x74] sm:$0xf]
    %v2332 = vld [vmem:[#allocation10 + $0x78] sm:$0xf]
    %v2333 = vld [vmem:[#allocation10 + $0x7c] sm:$0xf]
    %v2334 = vld [vmem:[%s6] sm:$0x1]
    %v2336 = vlaneseq
    %v2337 = vshrl.u32 %v2336, 7
    %v2338 = vsub.s32 0, %v2337
    %v2339 = vrot.slane %v2334, %v2338
    %v2373 = vunpack.c.l.b16 %v2302
    %v2374 = vunpack.c.l.b16 %v2303
    %v2375 = vunpack.c.l.b16 %v2304
    %v2376 = vunpack.c.l.b16 %v2305
    %v2377 = vunpack.c.l.b16 %v2306
    %v2378 = vunpack.c.l.b16 %v2307
    %v2379 = vunpack.c.l.b16 %v2308
    %v2380 = vunpack.c.l.b16 %v2309
    %v2381 = vunpack.c.l.b16 %v2310
    %v2382 = vunpack.c.l.b16 %v2311
    %v2383 = vunpack.c.l.b16 %v2312
    %v2384 = vunpack.c.l.b16 %v2313
    %v2385 = vunpack.c.l.b16 %v2314
    %v2386 = vunpack.c.l.b16 %v2315
    %v2387 = vunpack.c.l.b16 %v2316
    %v2388 = vunpack.c.l.b16 %v2317
    %v2389 = vunpack.c.l.b16 %v2318
    %v2390 = vunpack.c.l.b16 %v2319
    %v2391 = vunpack.c.l.b16 %v2320
    %v2392 = vunpack.c.l.b16 %v2321
    %v2393 = vunpack.c.l.b16 %v2322
    %v2394 = vunpack.c.l.b16 %v2323
    %v2395 = vunpack.c.l.b16 %v2324
    %v2396 = vunpack.c.l.b16 %v2325
    %v2397 = vunpack.c.l.b16 %v2326
    %v2398 = vunpack.c.l.b16 %v2327
    %v2399 = vunpack.c.l.b16 %v2328
    %v2400 = vunpack.c.l.b16 %v2329
    %v2401 = vunpack.c.l.b16 %v2330
    %v2402 = vunpack.c.l.b16 %v2331
    %v2403 = vunpack.c.l.b16 %v2332
    %v2404 = vunpack.c.l.b16 %v2333
    %v2405 = vpack.c.b16 %v2374, %v2373
    %v2406 = vpack.c.b16 %v2376, %v2375
    %v2407 = vpack.c.b16 %v2378, %v2377
    %v2408 = vpack.c.b16 %v2380, %v2379
    %v2409 = vpack.c.b16 %v2382, %v2381
    %v2410 = vpack.c.b16 %v2384, %v2383
    %v2411 = vpack.c.b16 %v2386, %v2385
    %v2412 = vpack.c.b16 %v2388, %v2387
    %v2413 = vpack.c.b16 %v2390, %v2389
    %v2414 = vpack.c.b16 %v2392, %v2391
    %v2415 = vpack.c.b16 %v2394, %v2393
    %v2416 = vpack.c.b16 %v2396, %v2395
    %v2417 = vpack.c.b16 %v2398, %v2397
    %v2418 = vpack.c.b16 %v2400, %v2399
    %v2419 = vpack.c.b16 %v2402, %v2401
    %v2420 = vpack.c.b16 %v2404, %v2403
    %2437 = vmatprep.subr.bf16.mxu0 0
    %2438 = vmatpush1.bf16.msra.mxu0 %v2412
    %2439 = vmatprep.subr.bf16.mxu0 0
    %2440 = vmatpush1.bf16.msra.mxu0 %v2411
    %2441 = vmatprep.subr.bf16.mxu0 0
    %2442 = vmatpush1.bf16.msra.mxu0 %v2410
    %2443 = vmatprep.subr.bf16.mxu0 0
    %2444 = vmatpush1.bf16.msra.mxu0 %v2409
    %2445 = vmatprep.subr.bf16.mxu0 0
    %2446 = vmatpush1.bf16.msra.mxu0 %v2408
    %2447 = vmatprep.subr.bf16.mxu0 0
    %2448 = vmatpush1.bf16.msra.mxu0 %v2407
    %2449 = vmatprep.subr.bf16.mxu0 0
    %2450 = vmatpush1.bf16.msra.mxu0 %v2406
    %2451 = vmatprep.subr.bf16.mxu0 0
    %2452 = vmatpush1.bf16.msra.mxu0 %v2405
    %2453 = vmatprep.subr.bf16.mxu0 0
    %2454 = vmatpush2.bf16.msra.mxu0 %v2420
    %2455 = vmatprep.subr.bf16.mxu0 0
    %2456 = vmatpush2.bf16.msra.mxu0 %v2419
    %2457 = vmatprep.subr.bf16.mxu0 0
    %2458 = vmatpush2.bf16.msra.mxu0 %v2418
    %2459 = vmatprep.subr.bf16.mxu0 0
    %2460 = vmatpush2.bf16.msra.mxu0 %v2417
    %2461 = vmatprep.subr.bf16.mxu0 0
    %2462 = vmatpush2.bf16.msra.mxu0 %v2416
    %2463 = vmatprep.subr.bf16.mxu0 0
    %2464 = vmatpush2.bf16.msra.mxu0 %v2415
    %2465 = vmatprep.subr.bf16.mxu0 0
    %2466 = vmatpush2.bf16.msra.mxu0 %v2414
    %2467 = vmatprep.subr.bf16.mxu0 0
    %2468 = vmatpush2.bf16.msra.mxu0 %v2413
    %2469 = vmatprep.mubr.bf16.mxu0 %v2301
    %2470 = vmatmul.mubr.bf16.gmra.mxu0 %v2300
    %v2471 = vpop.f32.mrf.mxu0
    %v2472 = vadd.f32 %v2339, %v2471
    %v2473 = vpop.f32.mrf.mxu0
    %v2474 = vpop.f32.mrf.mxu0
    %v2475 = vpop.f32.mrf.mxu0
    %2476 = vdwg.mxu0
    %2477 = vst [vmem:[#allocation11] sm:$0xff] %v2472
    // Predicated region
    $region50: #{tpu_custom_call.1} parent=1 // pred_check
      _
    $region51: #{tpu_custom_call.1} parent=1 // pred_check_branch
      %2479 = sbr.rel (0) target = $region53
    $region52: #{tpu_custom_call.1} parent=1 // pred_region
      %s2481 = ssub.s32 128, 128
      %2482 = vsyncadd [#allocation4], %s2481
      %s2484 = sshll.u32 [#allocation11], 4
      %s2485 = int_to_ptr.vmem [resolvable:$true] %s2484
      %2487 = dma.vmem_to_hbm [thread:$0]  %s2485, 128, %s7, [#allocation4]
    $region53: #{tpu_custom_call.1} parent=1 // pred_fallthru
      _
    // Predicated region
    $region54: #{tpu_custom_call.1} parent=1 // pred_check
      _
    $region55: #{tpu_custom_call.1} parent=1 // pred_check_branch
      %2489 = sbr.rel (0) target = $region57
    $region56: #{tpu_custom_call.1} parent=1 // pred_region
      %2490 = dma.done [#allocation4], 128
    $region57: #{tpu_custom_call.1} parent=1 // pred_fallthru
      _
    %2491 = vsyncpa [#allocation3], 1
    %2492 = vsyncpa [#allocation6], 1
    %2493 = vsyncpa [#allocation9], 1
    %2494 = vsyncpa [#allocation4], 1

</llo_original>
